<compile_context>
chip_gen: v7x
topology: tpu7x:2x2x1
jax: 0.10.0
libtpu: 0.0.40
codegen_flags: <defaults>
</compile_context>

<pallas_src>
import functools

import jax
import jax.numpy as jnp
from jax import lax
from jax.experimental import pallas as pl
from jax.experimental.pallas import tpu as pltpu


# ----------------------------------------------------------------------------
# Pallas kernel
# ----------------------------------------------------------------------------

def _make_conv_bn_relu_kernel(kh, kw, stride, oh, ow, cin, cot):
    """Fused conv + bias + ReLU over kh*kw statically-unrolled MXU matmuls."""
    taps = [(dh, dw) for dh in range(kh) for dw in range(kw)]

    def kernel(x_ref, w_ref, b_ref, o_ref):
        # x_ref: (stride*stride, Hs, Ws, cin)  bf16  phase-decomposed padded input (1 sample)
        # w_ref: (kh*kw, cin, cot)             bf16  BN-scale-folded weights (1 Cout tile)
        # b_ref: (1, cot)                      f32   folded BN bias
        # o_ref: (1, oh*ow, cot)               f32
        acc = jnp.zeros((oh * ow, cot), jnp.float32)
        for t, (dh, dw) in enumerate(taps):
            pi, oi = dh % stride, dh // stride
            pj, oj = dw % stride, dw // stride
            xs = x_ref[pi * stride + pj, oi:oi + oh, oj:oj + ow, :]   # (oh, ow, cin)
            acc = acc + jnp.dot(xs.reshape(oh * ow, cin), w_ref[t],
                                preferred_element_type=jnp.float32)
        o_ref[0] = jnp.maximum(acc + b_ref[...], 0.0)

    return kernel


# ----------------------------------------------------------------------------
# Wrapper (layout glue; no im2col materialization)
# ----------------------------------------------------------------------------

def _space_to_phases(x_nhwc, stride, kh, kw, oh, ow):
    """(N,Hp,Wp,C) -> (N*stride*stride, Hs, Ws, C), phase-major.

    After this, the slice needed for conv tap (dh, dw) is a *contiguous static*
    window of phase (dh % s, dw % s): rows [dh//s, dh//s + OH), cols [dw//s, dw//s + OW).
    """
    n, hp, wp, c = x_nhwc.shape
    hs = (kh - 1) // stride + oh
    ws = (kw - 1) // stride + ow
    ht, wt = stride * hs, stride * ws
    # pad (never-read zeros) or truncate (never-read rows/cols) to the exact phase extent
    x = jnp.pad(x_nhwc, ((0, 0), (0, max(0, ht - hp)), (0, max(0, wt - wp)), (0, 0)))
    x = x[:, :ht, :wt, :]
    x = x.reshape(n, hs, stride, ws, stride, c)
    x = jnp.transpose(x, (0, 2, 4, 1, 3, 5))          # (N, s, s, Hs, Ws, C)
    return x.reshape(n * stride * stride, hs, ws, c), hs, ws


def basic_conv2d(x_nchw, w_oihw, bn_scale, bn_bias, *, stride, padding):
    """Fused Conv2d(bias=False) + BatchNorm2d(inference) + ReLU. NCHW in, NCHW out."""
    n, cin, h, w = x_nchw.shape
    cout, cin_w, kh, kw = w_oihw.shape
    assert cin == cin_w
    oh = (h + 2 * padding - kh) // stride + 1
    ow = (w + 2 * padding - kw) // stride + 1

    x = jnp.transpose(x_nchw, (0, 2, 3, 1))                      # NHWC (channels -> lanes)
    if padding:
        x = jnp.pad(x, ((0, 0), (padding, padding), (padding, padding), (0, 0)))
    x_ph, hs, ws = _space_to_phases(x, stride, kh, kw, oh, ow)
    x_ph = x_ph.astype(jnp.bfloat16)

    # Fold the BN scale into the weights; only the bias-add + ReLU stays in the kernel.
    wm = jnp.transpose(w_oihw, (2, 3, 1, 0)).reshape(kh * kw, cin, cout)
    wm = (wm * bn_scale.reshape(1, 1, cout)).astype(jnp.bfloat16)
    bias = bn_bias.reshape(1, cout).astype(jnp.float32)

    cot = 128 if cout % 128 == 0 else cout                       # lane-dense Cout tiles
    n_ct = cout // cot
    ss = stride * stride
    m = oh * ow

    kernel = _make_conv_bn_relu_kernel(kh, kw, stride, oh, ow, cin, cot)
    out = pl.pallas_call(
        kernel,
        out_shape=jax.ShapeDtypeStruct((n, m, cout), jnp.float32),
        grid=(n, n_ct),
        in_specs=[
            pl.BlockSpec((ss, hs, ws, cin), lambda i, j: (i, 0, 0, 0)),
            pl.BlockSpec((kh * kw, cin, cot), lambda i, j: (0, 0, j)),
            pl.BlockSpec((1, cot), lambda i, j: (0, j)),
        ],
        out_specs=pl.BlockSpec((1, m, cot), lambda i, j: (i, 0, j)),
        compiler_params=pltpu.CompilerParams(
            dimension_semantics=("parallel", "parallel")),
    )(x_ph, wm, bias)

    out = out.reshape(n, oh, ow, cout)
    return jnp.transpose(out, (0, 3, 1, 2))                      # -> NCHW


# ----------------------------------------------------------------------------
# Deterministic parameters (BatchNorm folded to inference-mode scale/bias, eps=1e-3)
# ----------------------------------------------------------------------------

def make_params(key, cin, cout, k):
    kw_, kg, kb, km, kv = jax.random.split(key, 5)
    w = jax.random.normal(kw_, (cout, cin, k, k), jnp.float32) * 0.05
    gamma = jax.random.uniform(kg, (cout,), jnp.float32, 0.5, 1.5)
    beta = jax.random.normal(kb, (cout,), jnp.float32) * 0.1
    mean = jax.random.normal(km, (cout,), jnp.float32) * 0.1
    var = jax.random.uniform(kv, (cout,), jnp.float32, 0.5, 1.5)
    scale = gamma / jnp.sqrt(var + 1e-3)   # eps matches the PyTorch module
    bias = beta - mean * scale
    return w, scale, bias


# ----------------------------------------------------------------------------
# Pure-JAX reference (fp32, HIGHEST precision)
# ----------------------------------------------------------------------------

def basic_conv2d_ref(x_nchw, w_oihw, scale, bias, *, stride, padding):
    x = jnp.transpose(x_nchw, (0, 2, 3, 1))
    y = lax.conv_general_dilated(
        x, jnp.transpose(w_oihw, (2, 3, 1, 0)),
        window_strides=(stride, stride),
        padding=[(padding, padding), (padding, padding)],
        dimension_numbers=('NHWC', 'HWIO', 'NHWC'),
        precision=lax.Precision.HIGHEST)
    y = jnp.maximum(y * scale + bias, 0.0)
    return jnp.transpose(y, (0, 3, 1, 2))


# ----------------------------------------------------------------------------

if __name__ == "__main__":
    key = jax.random.PRNGKey(0)
    kx1, kp1, kx2, kp2 = jax.random.split(key, 4)

    # Config 1: BasicConv2d(128, 256, kernel_size=3, stride=2, padding=1)
    N, CIN, H, W = 2, 128, 16, 16
    COUT, K, STRIDE, PAD = 256, 3, 2, 1
    x1 = jax.random.normal(kx1, (N, CIN, H, W), jnp.float32)
    w1, s1, b1 = make_params(kp1, CIN, COUT, K)

    fwd1 = jax.jit(functools.partial(basic_conv2d, stride=STRIDE, padding=PAD))
    out1 = jax.block_until_ready(fwd1(x1, w1, s1, b1))
    OH = (H + 2 * PAD - K) // STRIDE + 1
    assert out1.shape == (N, COUT, OH, OH), out1.shape
    ref1 = basic_conv2d_ref(x1, w1, s1, b1, stride=STRIDE, padding=PAD)
    err1 = float(jnp.max(jnp.abs(out1 - ref1)))
    assert jnp.allclose(out1, ref1, rtol=3e-2, atol=3e-2), err1

    # Config 2: BasicConv2d(128, 128, kernel_size=1, stride=1, padding=0)
    x2 = jax.random.normal(kx2, (2, 128, 16, 16), jnp.float32)
    w2, s2, b2 = make_params(kp2, 128, 128, 1)
    fwd2 = jax.jit(functools.partial(basic_conv2d, stride=1, padding=0))
    out2 = jax.block_until_ready(fwd2(x2, w2, s2, b2))
    assert out2.shape == (2, 128, 16, 16), out2.shape
    ref2 = basic_conv2d_ref(x2, w2, s2, b2, stride=1, padding=0)
    err2 = float(jnp.max(jnp.abs(out2 - ref2)))
    assert jnp.allclose(out2, ref2, rtol=3e-2, atol=3e-2), err2

    print("KERNEL_OK")
</pallas_src>

<mosaic_0001>
module attributes {stable_mosaic.version = 11 : i64} {
  func.func @kernel(%arg0: i32, %arg1: i32, %arg2: memref<4x9x9x128xbf16, #tpu.memory_space<vmem>>, %arg3: memref<9x128x128xbf16, #tpu.memory_space<vmem>>, %arg4: memref<1x128xf32, #tpu.memory_space<vmem>>, %arg5: memref<1x64x128xf32, #tpu.memory_space<vmem>>) attributes {dimension_semantics = [#tpu.dimension_semantics<parallel>, #tpu.dimension_semantics<parallel>], iteration_bounds = array<i64: 2, 2>, scalar_prefetch = 0 : i64, scratch_operands = 0 : i64, tpu.core_type = #tpu.core_type<tc>, window_params = [{transform_indices = @transform_0, window_bounds = array<i64: 4, 9, 9, 128>}, {transform_indices = @transform_1, window_bounds = array<i64: 9, 128, 128>}, {transform_indices = @transform_2, window_bounds = array<i64: 1, 128>}, {transform_indices = @transform_3, window_bounds = array<i64: 1, 64, 128>}]} {
    %cst = arith.constant 0.000000e+00 : f32
    %0 = vector.broadcast %cst : f32 to vector<64x128xf32>
    %c0 = arith.constant 0 : index
    %c0_0 = arith.constant 0 : index
    %c0_1 = arith.constant 0 : index
    %c0_2 = arith.constant 0 : index
    %1 = vector.load %arg2[%c0, %c0_0, %c0_1, %c0_2] : memref<4x9x9x128xbf16, #tpu.memory_space<vmem>>, vector<1x8x8x128xbf16>
    %2 = vector.shape_cast %1 : vector<1x8x8x128xbf16> to vector<8x8x128xbf16>
    %3 = vector.shape_cast %2 : vector<8x8x128xbf16> to vector<64x128xbf16>
    %c0_3 = arith.constant 0 : index
    %c0_4 = arith.constant 0 : index
    %c0_5 = arith.constant 0 : index
    %4 = vector.load %arg3[%c0_3, %c0_4, %c0_5] : memref<9x128x128xbf16, #tpu.memory_space<vmem>>, vector<1x128x128xbf16>
    %5 = vector.shape_cast %4 : vector<1x128x128xbf16> to vector<128x128xbf16>
    %cst_6 = arith.constant dense<0.000000e+00> : vector<64x128xf32>
    %6 = tpu.matmul %3, %5, %cst_6 {dimension_numbers = #tpu.dot_dimension_numbers<[1], [0], [0], [1], [0, 0, 1, 1], [], []>} : vector<64x128xbf16>, vector<128x128xbf16>, vector<64x128xf32> -> vector<64x128xf32>
    %7 = arith.addf %0, %6 : vector<64x128xf32>
    %c1 = arith.constant 1 : index
    %c0_7 = arith.constant 0 : index
    %c0_8 = arith.constant 0 : index
    %c0_9 = arith.constant 0 : index
    %8 = vector.load %arg2[%c1, %c0_7, %c0_8, %c0_9] : memref<4x9x9x128xbf16, #tpu.memory_space<vmem>>, vector<1x8x8x128xbf16>
    %9 = vector.shape_cast %8 : vector<1x8x8x128xbf16> to vector<8x8x128xbf16>
    %10 = vector.shape_cast %9 : vector<8x8x128xbf16> to vector<64x128xbf16>
    %c1_10 = arith.constant 1 : index
    %c0_11 = arith.constant 0 : index
    %c0_12 = arith.constant 0 : index
    %11 = vector.load %arg3[%c1_10, %c0_11, %c0_12] : memref<9x128x128xbf16, #tpu.memory_space<vmem>>, vector<1x128x128xbf16>
    %12 = vector.shape_cast %11 : vector<1x128x128xbf16> to vector<128x128xbf16>
    %cst_13 = arith.constant dense<0.000000e+00> : vector<64x128xf32>
    %13 = tpu.matmul %10, %12, %cst_13 {dimension_numbers = #tpu.dot_dimension_numbers<[1], [0], [0], [1], [0, 0, 1, 1], [], []>} : vector<64x128xbf16>, vector<128x128xbf16>, vector<64x128xf32> -> vector<64x128xf32>
    %14 = arith.addf %7, %13 : vector<64x128xf32>
    %c0_14 = arith.constant 0 : index
    %c0_15 = arith.constant 0 : index
    %c1_16 = arith.constant 1 : index
    %c0_17 = arith.constant 0 : index
    %15 = vector.load %arg2[%c0_14, %c0_15, %c1_16, %c0_17] : memref<4x9x9x128xbf16, #tpu.memory_space<vmem>>, vector<1x8x8x128xbf16>
    %16 = vector.shape_cast %15 : vector<1x8x8x128xbf16> to vector<8x8x128xbf16>
    %17 = vector.shape_cast %16 : vector<8x8x128xbf16> to vector<64x128xbf16>
    %c2 = arith.constant 2 : index
    %c0_18 = arith.constant 0 : index
    %c0_19 = arith.constant 0 : index
    %18 = vector.load %arg3[%c2, %c0_18, %c0_19] : memref<9x128x128xbf16, #tpu.memory_space<vmem>>, vector<1x128x128xbf16>
    %19 = vector.shape_cast %18 : vector<1x128x128xbf16> to vector<128x128xbf16>
    %cst_20 = arith.constant dense<0.000000e+00> : vector<64x128xf32>
    %20 = tpu.matmul %17, %19, %cst_20 {dimension_numbers = #tpu.dot_dimension_numbers<[1], [0], [0], [1], [0, 0, 1, 1], [], []>} : vector<64x128xbf16>, vector<128x128xbf16>, vector<64x128xf32> -> vector<64x128xf32>
    %21 = arith.addf %14, %20 : vector<64x128xf32>
    %c2_21 = arith.constant 2 : index
    %c0_22 = arith.constant 0 : index
    %c0_23 = arith.constant 0 : index
    %c0_24 = arith.constant 0 : index
    %22 = vector.load %arg2[%c2_21, %c0_22, %c0_23, %c0_24] : memref<4x9x9x128xbf16, #tpu.memory_space<vmem>>, vector<1x8x8x128xbf16>
    %23 = vector.shape_cast %22 : vector<1x8x8x128xbf16> to vector<8x8x128xbf16>
    %24 = vector.shape_cast %23 : vector<8x8x128xbf16> to vector<64x128xbf16>
    %c3 = arith.constant 3 : index
    %c0_25 = arith.constant 0 : index
    %c0_26 = arith.constant 0 : index
    %25 = vector.load %arg3[%c3, %c0_25, %c0_26] : memref<9x128x128xbf16, #tpu.memory_space<vmem>>, vector<1x128x128xbf16>
    %26 = vector.shape_cast %25 : vector<1x128x128xbf16> to vector<128x128xbf16>
    %cst_27 = arith.constant dense<0.000000e+00> : vector<64x128xf32>
    %27 = tpu.matmul %24, %26, %cst_27 {dimension_numbers = #tpu.dot_dimension_numbers<[1], [0], [0], [1], [0, 0, 1, 1], [], []>} : vector<64x128xbf16>, vector<128x128xbf16>, vector<64x128xf32> -> vector<64x128xf32>
    %28 = arith.addf %21, %27 : vector<64x128xf32>
    %c3_28 = arith.constant 3 : index
    %c0_29 = arith.constant 0 : index
    %c0_30 = arith.constant 0 : index
    %c0_31 = arith.constant 0 : index
    %29 = vector.load %arg2[%c3_28, %c0_29, %c0_30, %c0_31] : memref<4x9x9x128xbf16, #tpu.memory_space<vmem>>, vector<1x8x8x128xbf16>
    %30 = vector.shape_cast %29 : vector<1x8x8x128xbf16> to vector<8x8x128xbf16>
    %31 = vector.shape_cast %30 : vector<8x8x128xbf16> to vector<64x128xbf16>
    %c4 = arith.constant 4 : index
    %c0_32 = arith.constant 0 : index
    %c0_33 = arith.constant 0 : index
    %32 = vector.load %arg3[%c4, %c0_32, %c0_33] : memref<9x128x128xbf16, #tpu.memory_space<vmem>>, vector<1x128x128xbf16>
    %33 = vector.shape_cast %32 : vector<1x128x128xbf16> to vector<128x128xbf16>
    %cst_34 = arith.constant dense<0.000000e+00> : vector<64x128xf32>
    %34 = tpu.matmul %31, %33, %cst_34 {dimension_numbers = #tpu.dot_dimension_numbers<[1], [0], [0], [1], [0, 0, 1, 1], [], []>} : vector<64x128xbf16>, vector<128x128xbf16>, vector<64x128xf32> -> vector<64x128xf32>
    %35 = arith.addf %28, %34 : vector<64x128xf32>
    %c2_35 = arith.constant 2 : index
    %c0_36 = arith.constant 0 : index
    %c1_37 = arith.constant 1 : index
    %c0_38 = arith.constant 0 : index
    %36 = vector.load %arg2[%c2_35, %c0_36, %c1_37, %c0_38] : memref<4x9x9x128xbf16, #tpu.memory_space<vmem>>, vector<1x8x8x128xbf16>
    %37 = vector.shape_cast %36 : vector<1x8x8x128xbf16> to vector<8x8x128xbf16>
    %38 = vector.shape_cast %37 : vector<8x8x128xbf16> to vector<64x128xbf16>
    %c5 = arith.constant 5 : index
    %c0_39 = arith.constant 0 : index
    %c0_40 = arith.constant 0 : index
    %39 = vector.load %arg3[%c5, %c0_39, %c0_40] : memref<9x128x128xbf16, #tpu.memory_space<vmem>>, vector<1x128x128xbf16>
    %40 = vector.shape_cast %39 : vector<1x128x128xbf16> to vector<128x128xbf16>
    %cst_41 = arith.constant dense<0.000000e+00> : vector<64x128xf32>
    %41 = tpu.matmul %38, %40, %cst_41 {dimension_numbers = #tpu.dot_dimension_numbers<[1], [0], [0], [1], [0, 0, 1, 1], [], []>} : vector<64x128xbf16>, vector<128x128xbf16>, vector<64x128xf32> -> vector<64x128xf32>
    %42 = arith.addf %35, %41 : vector<64x128xf32>
    %c0_42 = arith.constant 0 : index
    %c1_43 = arith.constant 1 : index
    %c0_44 = arith.constant 0 : index
    %c0_45 = arith.constant 0 : index
    %43 = vector.load %arg2[%c0_42, %c1_43, %c0_44, %c0_45] : memref<4x9x9x128xbf16, #tpu.memory_space<vmem>>, vector<1x8x8x128xbf16>
    %44 = vector.shape_cast %43 : vector<1x8x8x128xbf16> to vector<8x8x128xbf16>
    %45 = vector.shape_cast %44 : vector<8x8x128xbf16> to vector<64x128xbf16>
    %c6 = arith.constant 6 : index
    %c0_46 = arith.constant 0 : index
    %c0_47 = arith.constant 0 : index
    %46 = vector.load %arg3[%c6, %c0_46, %c0_47] : memref<9x128x128xbf16, #tpu.memory_space<vmem>>, vector<1x128x128xbf16>
    %47 = vector.shape_cast %46 : vector<1x128x128xbf16> to vector<128x128xbf16>
    %cst_48 = arith.constant dense<0.000000e+00> : vector<64x128xf32>
    %48 = tpu.matmul %45, %47, %cst_48 {dimension_numbers = #tpu.dot_dimension_numbers<[1], [0], [0], [1], [0, 0, 1, 1], [], []>} : vector<64x128xbf16>, vector<128x128xbf16>, vector<64x128xf32> -> vector<64x128xf32>
    %49 = arith.addf %42, %48 : vector<64x128xf32>
    %c1_49 = arith.constant 1 : index
    %c1_50 = arith.constant 1 : index
    %c0_51 = arith.constant 0 : index
    %c0_52 = arith.constant 0 : index
    %50 = vector.load %arg2[%c1_49, %c1_50, %c0_51, %c0_52] : memref<4x9x9x128xbf16, #tpu.memory_space<vmem>>, vector<1x8x8x128xbf16>
    %51 = vector.shape_cast %50 : vector<1x8x8x128xbf16> to vector<8x8x128xbf16>
    %52 = vector.shape_cast %51 : vector<8x8x128xbf16> to vector<64x128xbf16>
    %c7 = arith.constant 7 : index
    %c0_53 = arith.constant 0 : index
    %c0_54 = arith.constant 0 : index
    %53 = vector.load %arg3[%c7, %c0_53, %c0_54] : memref<9x128x128xbf16, #tpu.memory_space<vmem>>, vector<1x128x128xbf16>
    %54 = vector.shape_cast %53 : vector<1x128x128xbf16> to vector<128x128xbf16>
    %cst_55 = arith.constant dense<0.000000e+00> : vector<64x128xf32>
    %55 = tpu.matmul %52, %54, %cst_55 {dimension_numbers = #tpu.dot_dimension_numbers<[1], [0], [0], [1], [0, 0, 1, 1], [], []>} : vector<64x128xbf16>, vector<128x128xbf16>, vector<64x128xf32> -> vector<64x128xf32>
    %56 = arith.addf %49, %55 : vector<64x128xf32>
    %c0_56 = arith.constant 0 : index
    %c1_57 = arith.constant 1 : index
    %c1_58 = arith.constant 1 : index
    %c0_59 = arith.constant 0 : index
    %57 = vector.load %arg2[%c0_56, %c1_57, %c1_58, %c0_59] : memref<4x9x9x128xbf16, #tpu.memory_space<vmem>>, vector<1x8x8x128xbf16>
    %58 = vector.shape_cast %57 : vector<1x8x8x128xbf16> to vector<8x8x128xbf16>
    %59 = vector.shape_cast %58 : vector<8x8x128xbf16> to vector<64x128xbf16>
    %c8 = arith.constant 8 : index
    %c0_60 = arith.constant 0 : index
    %c0_61 = arith.constant 0 : index
    %60 = vector.load %arg3[%c8, %c0_60, %c0_61] : memref<9x128x128xbf16, #tpu.memory_space<vmem>>, vector<1x128x128xbf16>
    %61 = vector.shape_cast %60 : vector<1x128x128xbf16> to vector<128x128xbf16>
    %cst_62 = arith.constant dense<0.000000e+00> : vector<64x128xf32>
    %62 = tpu.matmul %59, %61, %cst_62 {dimension_numbers = #tpu.dot_dimension_numbers<[1], [0], [0], [1], [0, 0, 1, 1], [], []>} : vector<64x128xbf16>, vector<128x128xbf16>, vector<64x128xf32> -> vector<64x128xf32>
    %63 = arith.addf %56, %62 : vector<64x128xf32>
    %c0_63 = arith.constant 0 : index
    %c0_64 = arith.constant 0 : index
    %64 = vector.load %arg4[%c0_63, %c0_64] : memref<1x128xf32, #tpu.memory_space<vmem>>, vector<1x128xf32>
    %65 = vector.broadcast %64 : vector<1x128xf32> to vector<64x128xf32>
    %66 = arith.addf %63, %65 : vector<64x128xf32>
    %cst_65 = arith.constant 0.000000e+00 : f32
    %67 = vector.broadcast %cst_65 : f32 to vector<64x128xf32>
    %68 = arith.maximumf %66, %67 : vector<64x128xf32>
    %c0_66 = arith.constant 0 : index
    %c0_67 = arith.constant 0 : index
    %c0_68 = arith.constant 0 : index
    %69 = vector.load %arg5[%c0_66, %c0_67, %c0_68] : memref<1x64x128xf32, #tpu.memory_space<vmem>>, vector<1x64x128xf32>
    %70 = vector.shape_cast %69 : vector<1x64x128xf32> to vector<64x128xf32>
    %71 = vector.shape_cast %68 : vector<64x128xf32> to vector<1x64x128xf32>
    tpu.vector_store %arg5[%c0_66, %c0_67, %c0_68], %71 {strides = array<i32>} : memref<1x64x128xf32, #tpu.memory_space<vmem>>, vector<1x64x128xf32>,
    return
  }
  func.func @transform_0(%arg0: i32, %arg1: i32) -> (i32, i32, i32, i32) {
    %c0_i32 = arith.constant 0 : i32
    %c0_i32_0 = arith.constant 0 : i32
    %c0_i32_1 = arith.constant 0 : i32
    %c0_i32_2 = arith.constant 0 : i32
    return %arg0, %c0_i32, %c0_i32_0, %c0_i32_1 : i32, i32, i32, i32
  }
  func.func @transform_1(%arg0: i32, %arg1: i32) -> (i32, i32, i32) {
    %c0_i32 = arith.constant 0 : i32
    %c0_i32_0 = arith.constant 0 : i32
    %c0_i32_1 = arith.constant 0 : i32
    return %c0_i32, %c0_i32_0, %arg1 : i32, i32, i32
  }
  func.func @transform_2(%arg0: i32, %arg1: i32) -> (i32, i32) {
    %c0_i32 = arith.constant 0 : i32
    %c0_i32_0 = arith.constant 0 : i32
    return %c0_i32, %arg1 : i32, i32
  }
  func.func @transform_3(%arg0: i32, %arg1: i32) -> (i32, i32, i32) {
    %c0_i32 = arith.constant 0 : i32
    %c0_i32_0 = arith.constant 0 : i32
    return %arg0, %c0_i32, %arg1 : i32, i32, i32
  }
}

</mosaic_0001>

<llo_original>
// kernel: basic_conv2d.1
$region0: #{basic_conv2d.1}
  #allocation0 [shape = 'u32[]', space=smem, size = 0x4, offset = 0x4, fixed_abs, tag = 'smem constant byte address 0x4 - core index']
  #allocation1 [shape = 'u32[144,128]{1,0:T(1,128)}', space=vmem, size = 0x12000, scoped, tag = 'internal scratch']
  %s0 = inlined_call_operand.vmem [shape: bf16[8,9,9,128], index: 0, kind: input, shape index: {}]
  %s1 = inlined_call_operand.vmem [shape: bf16[9,128,256], index: 1, kind: input, shape index: {}]
  %s2 = inlined_call_operand.vmem [shape: f32[1,256], index: 2, kind: input, shape index: {}]
  %s3 = inlined_call_operand.hbm [shape: f32[2,64,256], index: 3, kind: output, shape index: {}]
  %s4 = sld [smem:[#allocation0]]
  $region86: #{basic_conv2d.1} parent=0
    _
  %s6 = ssub.s32 1, %s4
  %s7 = scalar_select 0, %s6, %s4
  $region1: #{basic_conv2d.1} parent=0
    #allocation2 [shape = 'u8[589824]{0}', space=vmem, size = 0x90000, scoped, tag = 'input window, operand 1']
    #allocation3 [shape = 'u8[65536]{0}', space=vmem, size = 0x10000, scoped, tag = 'output window, operand 0']
    #allocation4 [shape = 's32[2]{0}', space=sflag, size = 0x8, scoped, tag = 'scoped memory for basic_conv2d.1']
    %8 = vsyncpa [#allocation4], 0
    %s9 = scalar_lea.sflag [#allocation4], 1
    %10 = vsyncpa %s9, 0
    loop: start=0, step=1, limit=6
    $region2: #{basic_conv2d.1} parent=1 // loop_pre_header
      _
    $region3: #{basic_conv2d.1} parent=1 // loop_header
      %s12 = sphi 0, %s16
      %p13 = scmp.ge.s32.totalorder %s12, 6
      %s19 = sphi 0, %s31
      %s20 = sphi 0, %s27
      %s21 = sphi 0, %s19
      %s22 = sphi 0, %s20
      %s23 = sphi 0, %s21
      %s24 = sphi 0, %s22
      %s34 = sphi 0, %s36
      %s37 = sphi 0, %s34
      %s38 = sphi 0, %s37
      %s54 = sphi 0, %s38
      %s60 = sphi 0, %s62
      %s63 = sphi 0, %s60
      %s64 = sphi 0, %s63
      %s80 = sphi 0, %s64
      %s86 = sphi 0, %s88
      %s89 = sphi 0, %s86
      %s90 = sphi 0, %s89
      %s106 = sphi 0, %s90
      %s114 = sphi 0, %s116
      %s117 = sphi 0, %s114
      %s118 = sphi 0, %s117
      %s134 = sphi 0, %s118
    $region4: #{basic_conv2d.1} parent=1 // loop_header_branch
      %15 = sbr.rel (%p13) target = $region8
    $region5: #{basic_conv2d.1} parent=1 // loop_body
      %s17 = ssub.s32 %s12, 1
      %s18 = ssub.s32 %s12, 2
      %s25 = sadd.s32 1, %s20
      %p26 = scmp.ge.s32.totalorder %s25, 2
      %s27 = scalar_select %p26, 0, %s25
      %s28 = sadd.s32 1, %s19
      %s29 = scalar_select %p26, %s28, %s19
      %p30 = scmp.ge.s32.totalorder %s29, 2
      %s31 = scalar_select %p30, 0, %s29
      %s32 = ssub.s32 %s19, %s31
      %p33 = scmp.eq.s32.totalorder %s32, 0
      %s35 = sadd.s32 %s34, 1
      %s36 = scalar_select %p33, %s34, %s35
      %p39 = pneg %p33
      %p40 = scmp.eq.s32.totalorder %s12, 3
      %p41 = por %p39, %p40
      %p42 = scmp.ne.s32.totalorder %s34, %s37
      %p43 = scmp.eq.s32.totalorder %s12, 0
      %p44 = por %p42, %p43
      %p45 = scmp.ne.s32.totalorder %s34, %s37
      %p46 = scmp.eq.s32.totalorder %s17, 3
      %p47 = por %p45, %p46
      %p48 = scmp.ne.s32.totalorder %s37, %s38
      %p49 = scmp.eq.s32.totalorder %s17, 0
      %p50 = por %p48, %p49
      %p51 = scmp.ne.s32.totalorder %s37, %s38
      %p52 = scmp.eq.s32.totalorder %s18, 3
      %p53 = por %p51, %p52
      %p55 = scmp.ne.s32.totalorder %s38, %s54
      %p56 = scmp.eq.s32.totalorder %s18, 0
      %p57 = por %p55, %p56
      %s58 = ssub.s32 %s20, %s27
      %p59 = scmp.eq.s32.totalorder %s58, 0
      %s61 = sadd.s32 %s60, 1
      %s62 = scalar_select %p59, %s60, %s61
      %p65 = pneg %p59
      %p66 = scmp.eq.s32.totalorder %s12, 3
      %p67 = por %p65, %p66
      %p68 = scmp.ne.s32.totalorder %s60, %s63
      %p69 = scmp.eq.s32.totalorder %s12, 0
      %p70 = por %p68, %p69
      %p71 = scmp.ne.s32.totalorder %s60, %s63
      %p72 = scmp.eq.s32.totalorder %s17, 3
      %p73 = por %p71, %p72
      %p74 = scmp.ne.s32.totalorder %s63, %s64
      %p75 = scmp.eq.s32.totalorder %s17, 0
      %p76 = por %p74, %p75
      %p77 = scmp.ne.s32.totalorder %s63, %s64
      %p78 = scmp.eq.s32.totalorder %s18, 3
      %p79 = por %p77, %p78
      %p81 = scmp.ne.s32.totalorder %s64, %s80
      %p82 = scmp.eq.s32.totalorder %s18, 0
      %p83 = por %p81, %p82
      %s84 = ssub.s32 %s20, %s27
      %p85 = scmp.eq.s32.totalorder %s84, 0
      %s87 = sadd.s32 %s86, 1
      %s88 = scalar_select %p85, %s86, %s87
      %p91 = pneg %p85
      %p92 = scmp.eq.s32.totalorder %s12, 3
      %p93 = por %p91, %p92
      %p94 = scmp.ne.s32.totalorder %s86, %s89
      %p95 = scmp.eq.s32.totalorder %s12, 0
      %p96 = por %p94, %p95
      %p97 = scmp.ne.s32.totalorder %s86, %s89
      %p98 = scmp.eq.s32.totalorder %s17, 3
      %p99 = por %p97, %p98
      %p100 = scmp.ne.s32.totalorder %s89, %s90
      %p101 = scmp.eq.s32.totalorder %s17, 0
      %p102 = por %p100, %p101
      %p103 = scmp.ne.s32.totalorder %s89, %s90
      %p104 = scmp.eq.s32.totalorder %s18, 3
      %p105 = por %p103, %p104
      %p107 = scmp.ne.s32.totalorder %s90, %s106
      %p108 = scmp.eq.s32.totalorder %s18, 0
      %p109 = por %p107, %p108
      %s110 = ssub.s32 %s19, %s31
      %s111 = ssub.s32 %s20, %s27
      %s112 = sor.u32 %s110, %s111
      %p113 = scmp.eq.s32.totalorder %s112, 0
      %s115 = sadd.s32 %s114, 1
      %s116 = scalar_select %p113, %s114, %s115
      %p119 = pneg %p113
      %p120 = scmp.eq.s32.totalorder %s12, 3
      %p121 = por %p119, %p120
      %p122 = scmp.ne.s32.totalorder %s114, %s117
      %p123 = scmp.eq.s32.totalorder %s12, 0
      %p124 = por %p122, %p123
      %p125 = scmp.ne.s32.totalorder %s114, %s117
      %p126 = scmp.eq.s32.totalorder %s17, 3
      %p127 = por %p125, %p126
      %p128 = scmp.ne.s32.totalorder %s117, %s118
      %p129 = scmp.eq.s32.totalorder %s17, 0
      %p130 = por %p128, %p129
      %p131 = scmp.ne.s32.totalorder %s117, %s118
      %p132 = scmp.eq.s32.totalorder %s18, 3
      %p133 = por %p131, %p132
      %p135 = scmp.ne.s32.totalorder %s118, %s134
      %p136 = scmp.eq.s32.totalorder %s18, 0
      %p137 = por %p135, %p136
      %p138 = scmp.le.s32.totalorder 1, %s12
      %p139 = scmp.lt.s32.totalorder %s12, 5
      %p140 = pnand %p138, %p139
      %p141 = pneg %p140
      // Predicated region
      $region9: #{basic_conv2d.1} parent=5 // pred_check
        _
      $region10: #{basic_conv2d.1} parent=5 // pred_check_branch
        %143 = sbr.rel (%p140) target = $region12
      $region11: #{basic_conv2d.1} parent=5 // pred_region
        %s144 = ssub.s32 %s12, 1
      $region12: #{basic_conv2d.1} parent=5 // pred_fallthru
        _
      %p145 = scmp.lt.s32.totalorder %s12, 4
      // Predicated region
      $region13: #{basic_conv2d.1} parent=5 // pred_check
        %p146 = pneg %p145
      $region14: #{basic_conv2d.1} parent=5 // pred_check_branch
        %148 = sbr.rel (%p146) target = $region16
      $region15: #{basic_conv2d.1} parent=5 // pred_region
        // Predicated region
        $region17: #{basic_conv2d.1} parent=15 // pred_check
          %p149 = pneg %p44
        $region18: #{basic_conv2d.1} parent=15 // pred_check_branch
          %151 = sbr.rel (%p149) target = $region20
        $region19: #{basic_conv2d.1} parent=15 // pred_region
          %s152 = smul.u32 4, %s19
          %p153 = scmp.lt.s32.totalorder %s152, 7
          %s154 = scalar_select %p153, %s152, 7
          %s155 = smul.addr %s154, 18
          %s156 = smul.addr %s155, 4
          %s157 = scalar_lea.vmem %s0, %s156
          %s158 = smul.u32 4, %s19
        $region20: #{basic_conv2d.1} parent=15 // pred_fallthru
          _
        // Predicated region
        $region21: #{basic_conv2d.1} parent=15 // pred_check
          %p159 = pneg %p70
        $region22: #{basic_conv2d.1} parent=15 // pred_check_branch
          %161 = sbr.rel (%p159) target = $region24
        $region23: #{basic_conv2d.1} parent=15 // pred_region
          %s162 = sand.u32 %s60, 1
          %s163 = sand.u32 %s60, 1
          %s164 = smul.addr %s163, 576
          %s165 = scalar_lea.vmem [#allocation2], %s164
          %s166 = smul.addr %s20, 4
          %s167 = scalar_lea.vmem %s1, %s166
          // Predicated region
          $region25: #{basic_conv2d.1} parent=23 // pred_check
            _
          $region26: #{basic_conv2d.1} parent=23 // pred_check_branch
            %169 = sbr.rel (0) target = $region28
          $region27: #{basic_conv2d.1} parent=23 // pred_region
            // Predicated region
            $region29: #{basic_conv2d.1} parent=27 // pred_check
              _
            $region30: #{basic_conv2d.1} parent=27 // pred_check_branch
              %171 = sbr.rel target = $region32
            $region31: #{basic_conv2d.1} parent=27 // pred_region
              // Predicated region
              $region44: #{basic_conv2d.1} parent=31 // pred_check
                _
              $region45: #{basic_conv2d.1} parent=31 // pred_check_branch
                %472 = sbr.rel (0) target = $region47
              $region46: #{basic_conv2d.1} parent=31 // pred_region
                loop: start=0, step=1, limit=1
                $region48: #{basic_conv2d.1} parent=46 // loop_pre_header
                  _
                $region49: #{basic_conv2d.1} parent=46 // loop_header
                  %s474 = sphi 0, %s478
                  %p475 = scmp.ge.s32.totalorder %s474, 1
                  %s479 = sphi %s167, %s167
                  %s480 = sphi %s165, %s165
                $region50: #{basic_conv2d.1} parent=46 // loop_header_branch
                  %477 = sbr.rel (%p475) target = $region54
                $region51: #{basic_conv2d.1} parent=46 // loop_body
                  _
                $region52: #{basic_conv2d.1} parent=46 // loop_footer
                  %s478 = sadd.s32 1, %s474
                $region53: #{basic_conv2d.1} parent=46 // loop_footer_branch
                  %473 = sbr.rel target = $region49
                $region54: #{basic_conv2d.1} parent=46 // loop_exit
                  _
                loop: start=0, step=1, limit=1
                $region55: #{basic_conv2d.1} parent=46 // loop_pre_header
                  _
                $region56: #{basic_conv2d.1} parent=46 // loop_header
                  %s483 = sphi 0, %s487
                  %p484 = scmp.ge.s32.totalorder %s483, 1
                  %s488 = sphi %s167, %s167
                  %s489 = sphi %s165, %s165
                $region57: #{basic_conv2d.1} parent=46 // loop_header_branch
                  %486 = sbr.rel (%p484) target = $region61
                $region58: #{basic_conv2d.1} parent=46 // loop_body
                  %v490 = vld [vmem:[%s488] sm:$0xf]
                  %491 = vst [vmem:[%s489] sm:$0xf] %v490
                  %v492 = vld [vmem:[%s488 + $0x8] sm:$0xf]
                  %493 = vst [vmem:[%s489 + $0x4] sm:$0xf] %v492
                  %v494 = vld [vmem:[%s488 + $0x10] sm:$0xf]
                  %495 = vst [vmem:[%s489 + $0x8] sm:$0xf] %v494
                  %v496 = vld [vmem:[%s488 + $0x18] sm:$0xf]
                  %497 = vst [vmem:[%s489 + $0xc] sm:$0xf] %v496
                  %v498 = vld [vmem:[%s488 + $0x20] sm:$0xf]
                  %499 = vst [vmem:[%s489 + $0x10] sm:$0xf] %v498
                  %v500 = vld [vmem:[%s488 + $0x28] sm:$0xf]
                  %501 = vst [vmem:[%s489 + $0x14] sm:$0xf] %v500
                  %v502 = vld [vmem:[%s488 + $0x30] sm:$0xf]
                  %503 = vst [vmem:[%s489 + $0x18] sm:$0xf] %v502
                  %v504 = vld [vmem:[%s488 + $0x38] sm:$0xf]
                  %505 = vst [vmem:[%s489 + $0x1c] sm:$0xf] %v504
                  %v506 = vld [vmem:[%s488 + $0x40] sm:$0xf]
                  %507 = vst [vmem:[%s489 + $0x20] sm:$0xf] %v506
                  %v508 = vld [vmem:[%s488 + $0x48] sm:$0xf]
                  %509 = vst [vmem:[%s489 + $0x24] sm:$0xf] %v508
                  %v510 = vld [vmem:[%s488 + $0x50] sm:$0xf]
                  %511 = vst [vmem:[%s489 + $0x28] sm:$0xf] %v510
                  %v512 = vld [vmem:[%s488 + $0x58] sm:$0xf]
                  %513 = vst [vmem:[%s489 + $0x2c] sm:$0xf] %v512
                  %v514 = vld [vmem:[%s488 + $0x60] sm:$0xf]
                  %515 = vst [vmem:[%s489 + $0x30] sm:$0xf] %v514
                  %v516 = vld [vmem:[%s488 + $0x68] sm:$0xf]
                  %517 = vst [vmem:[%s489 + $0x34] sm:$0xf] %v516
                  %v518 = vld [vmem:[%s488 + $0x70] sm:$0xf]
                  %519 = vst [vmem:[%s489 + $0x38] sm:$0xf] %v518
                  %v520 = vld [vmem:[%s488 + $0x78] sm:$0xf]
                  %521 = vst [vmem:[%s489 + $0x3c] sm:$0xf] %v520
                  %v522 = vld [vmem:[%s488 + $0x80] sm:$0xf]
                  %523 = vst [vmem:[%s489 + $0x40] sm:$0xf] %v522
                  %v524 = vld [vmem:[%s488 + $0x88] sm:$0xf]
                  %525 = vst [vmem:[%s489 + $0x44] sm:$0xf] %v524
                  %v526 = vld [vmem:[%s488 + $0x90] sm:$0xf]
                  %527 = vst [vmem:[%s489 + $0x48] sm:$0xf] %v526
                  %v528 = vld [vmem:[%s488 + $0x98] sm:$0xf]
                  %529 = vst [vmem:[%s489 + $0x4c] sm:$0xf] %v528
                  %v530 = vld [vmem:[%s488 + $0xa0] sm:$0xf]
                  %531 = vst [vmem:[%s489 + $0x50] sm:$0xf] %v530
                  %v532 = vld [vmem:[%s488 + $0xa8] sm:$0xf]
                  %533 = vst [vmem:[%s489 + $0x54] sm:$0xf] %v532
                  %v534 = vld [vmem:[%s488 + $0xb0] sm:$0xf]
                  %535 = vst [vmem:[%s489 + $0x58] sm:$0xf] %v534
                  %v536 = vld [vmem:[%s488 + $0xb8] sm:$0xf]
                  %537 = vst [vmem:[%s489 + $0x5c] sm:$0xf] %v536
                  %v538 = vld [vmem:[%s488 + $0xc0] sm:$0xf]
                  %539 = vst [vmem:[%s489 + $0x60] sm:$0xf] %v538
                  %v540 = vld [vmem:[%s488 + $0xc8] sm:$0xf]
                  %541 = vst [vmem:[%s489 + $0x64] sm:$0xf] %v540
                  %v542 = vld [vmem:[%s488 + $0xd0] sm:$0xf]
                  %543 = vst [vmem:[%s489 + $0x68] sm:$0xf] %v542
                  %v544 = vld [vmem:[%s488 + $0xd8] sm:$0xf]
                  %545 = vst [vmem:[%s489 + $0x6c] sm:$0xf] %v544
                  %v546 = vld [vmem:[%s488 + $0xe0] sm:$0xf]
                  %547 = vst [vmem:[%s489 + $0x70] sm:$0xf] %v546
                  %v548 = vld [vmem:[%s488 + $0xe8] sm:$0xf]
                  %549 = vst [vmem:[%s489 + $0x74] sm:$0xf] %v548
                  %v550 = vld [vmem:[%s488 + $0xf0] sm:$0xf]
                  %551 = vst [vmem:[%s489 + $0x78] sm:$0xf] %v550
                  %v552 = vld [vmem:[%s488 + $0xf8] sm:$0xf]
                  %553 = vst [vmem:[%s489 + $0x7c] sm:$0xf] %v552
                  %v554 = vld [vmem:[%s488 + $0x100] sm:$0xf]
                  %555 = vst [vmem:[%s489 + $0x80] sm:$0xf] %v554
                  %v556 = vld [vmem:[%s488 + $0x108] sm:$0xf]
                  %557 = vst [vmem:[%s489 + $0x84] sm:$0xf] %v556
                  %v558 = vld [vmem:[%s488 + $0x110] sm:$0xf]
                  %559 = vst [vmem:[%s489 + $0x88] sm:$0xf] %v558
                  %v560 = vld [vmem:[%s488 + $0x118] sm:$0xf]
                  %561 = vst [vmem:[%s489 + $0x8c] sm:$0xf] %v560
                  %v562 = vld [vmem:[%s488 + $0x120] sm:$0xf]
                  %563 = vst [vmem:[%s489 + $0x90] sm:$0xf] %v562
                  %v564 = vld [vmem:[%s488 + $0x128] sm:$0xf]
                  %565 = vst [vmem:[%s489 + $0x94] sm:$0xf] %v564
                  %v566 = vld [vmem:[%s488 + $0x130] sm:$0xf]
                  %567 = vst [vmem:[%s489 + $0x98] sm:$0xf] %v566
                  %v568 = vld [vmem:[%s488 + $0x138] sm:$0xf]
                  %569 = vst [vmem:[%s489 + $0x9c] sm:$0xf] %v568
                  %v570 = vld [vmem:[%s488 + $0x140] sm:$0xf]
                  %571 = vst [vmem:[%s489 + $0xa0] sm:$0xf] %v570
                  %v572 = vld [vmem:[%s488 + $0x148] sm:$0xf]
                  %573 = vst [vmem:[%s489 + $0xa4] sm:$0xf] %v572
                  %v574 = vld [vmem:[%s488 + $0x150] sm:$0xf]
                  %575 = vst [vmem:[%s489 + $0xa8] sm:$0xf] %v574
                  %v576 = vld [vmem:[%s488 + $0x158] sm:$0xf]
                  %577 = vst [vmem:[%s489 + $0xac] sm:$0xf] %v576
                  %v578 = vld [vmem:[%s488 + $0x160] sm:$0xf]
                  %579 = vst [vmem:[%s489 + $0xb0] sm:$0xf] %v578
                  %v580 = vld [vmem:[%s488 + $0x168] sm:$0xf]
                  %581 = vst [vmem:[%s489 + $0xb4] sm:$0xf] %v580
                  %v582 = vld [vmem:[%s488 + $0x170] sm:$0xf]
                  %583 = vst [vmem:[%s489 + $0xb8] sm:$0xf] %v582
                  %v584 = vld [vmem:[%s488 + $0x178] sm:$0xf]
                  %585 = vst [vmem:[%s489 + $0xbc] sm:$0xf] %v584
                  %v586 = vld [vmem:[%s488 + $0x180] sm:$0xf]
                  %587 = vst [vmem:[%s489 + $0xc0] sm:$0xf] %v586
                  %v588 = vld [vmem:[%s488 + $0x188] sm:$0xf]
                  %589 = vst [vmem:[%s489 + $0xc4] sm:$0xf] %v588
                  %v590 = vld [vmem:[%s488 + $0x190] sm:$0xf]
                  %591 = vst [vmem:[%s489 + $0xc8] sm:$0xf] %v590
                  %v592 = vld [vmem:[%s488 + $0x198] sm:$0xf]
                  %593 = vst [vmem:[%s489 + $0xcc] sm:$0xf] %v592
                  %v594 = vld [vmem:[%s488 + $0x1a0] sm:$0xf]
                  %595 = vst [vmem:[%s489 + $0xd0] sm:$0xf] %v594
                  %v596 = vld [vmem:[%s488 + $0x1a8] sm:$0xf]
                  %597 = vst [vmem:[%s489 + $0xd4] sm:$0xf] %v596
                  %v598 = vld [vmem:[%s488 + $0x1b0] sm:$0xf]
                  %599 = vst [vmem:[%s489 + $0xd8] sm:$0xf] %v598
                  %v600 = vld [vmem:[%s488 + $0x1b8] sm:$0xf]
                  %601 = vst [vmem:[%s489 + $0xdc] sm:$0xf] %v600
                  %v602 = vld [vmem:[%s488 + $0x1c0] sm:$0xf]
                  %603 = vst [vmem:[%s489 + $0xe0] sm:$0xf] %v602
                  %v604 = vld [vmem:[%s488 + $0x1c8] sm:$0xf]
                  %605 = vst [vmem:[%s489 + $0xe4] sm:$0xf] %v604
                  %v606 = vld [vmem:[%s488 + $0x1d0] sm:$0xf]
                  %607 = vst [vmem:[%s489 + $0xe8] sm:$0xf] %v606
                  %v608 = vld [vmem:[%s488 + $0x1d8] sm:$0xf]
                  %609 = vst [vmem:[%s489 + $0xec] sm:$0xf] %v608
                  %v610 = vld [vmem:[%s488 + $0x1e0] sm:$0xf]
                  %611 = vst [vmem:[%s489 + $0xf0] sm:$0xf] %v610
                  %v612 = vld [vmem:[%s488 + $0x1e8] sm:$0xf]
                  %613 = vst [vmem:[%s489 + $0xf4] sm:$0xf] %v612
                  %v614 = vld [vmem:[%s488 + $0x1f0] sm:$0xf]
                  %615 = vst [vmem:[%s489 + $0xf8] sm:$0xf] %v614
                  %v616 = vld [vmem:[%s488 + $0x1f8] sm:$0xf]
                  %617 = vst [vmem:[%s489 + $0xfc] sm:$0xf] %v616
                  %v618 = vld [vmem:[%s488 + $0x200] sm:$0xf]
                  %619 = vst [vmem:[%s489 + $0x100] sm:$0xf] %v618
                  %v620 = vld [vmem:[%s488 + $0x208] sm:$0xf]
                  %621 = vst [vmem:[%s489 + $0x104] sm:$0xf] %v620
                  %v622 = vld [vmem:[%s488 + $0x210] sm:$0xf]
                  %623 = vst [vmem:[%s489 + $0x108] sm:$0xf] %v622
                  %v624 = vld [vmem:[%s488 + $0x218] sm:$0xf]
                  %625 = vst [vmem:[%s489 + $0x10c] sm:$0xf] %v624
                  %v626 = vld [vmem:[%s488 + $0x220] sm:$0xf]
                  %627 = vst [vmem:[%s489 + $0x110] sm:$0xf] %v626
                  %v628 = vld [vmem:[%s488 + $0x228] sm:$0xf]
                  %629 = vst [vmem:[%s489 + $0x114] sm:$0xf] %v628
                  %v630 = vld [vmem:[%s488 + $0x230] sm:$0xf]
                  %631 = vst [vmem:[%s489 + $0x118] sm:$0xf] %v630
                  %v632 = vld [vmem:[%s488 + $0x238] sm:$0xf]
                  %633 = vst [vmem:[%s489 + $0x11c] sm:$0xf] %v632
                  %v634 = vld [vmem:[%s488 + $0x240] sm:$0xf]
                  %635 = vst [vmem:[%s489 + $0x120] sm:$0xf] %v634
                  %v636 = vld [vmem:[%s488 + $0x248] sm:$0xf]
                  %637 = vst [vmem:[%s489 + $0x124] sm:$0xf] %v636
                  %v638 = vld [vmem:[%s488 + $0x250] sm:$0xf]
                  %639 = vst [vmem:[%s489 + $0x128] sm:$0xf] %v638
                  %v640 = vld [vmem:[%s488 + $0x258] sm:$0xf]
                  %641 = vst [vmem:[%s489 + $0x12c] sm:$0xf] %v640
                  %v642 = vld [vmem:[%s488 + $0x260] sm:$0xf]
                  %643 = vst [vmem:[%s489 + $0x130] sm:$0xf] %v642
                  %v644 = vld [vmem:[%s488 + $0x268] sm:$0xf]
                  %645 = vst [vmem:[%s489 + $0x134] sm:$0xf] %v644
                  %v646 = vld [vmem:[%s488 + $0x270] sm:$0xf]
                  %647 = vst [vmem:[%s489 + $0x138] sm:$0xf] %v646
                  %v648 = vld [vmem:[%s488 + $0x278] sm:$0xf]
                  %649 = vst [vmem:[%s489 + $0x13c] sm:$0xf] %v648
                  %v650 = vld [vmem:[%s488 + $0x280] sm:$0xf]
                  %651 = vst [vmem:[%s489 + $0x140] sm:$0xf] %v650
                  %v652 = vld [vmem:[%s488 + $0x288] sm:$0xf]
                  %653 = vst [vmem:[%s489 + $0x144] sm:$0xf] %v652
                  %v654 = vld [vmem:[%s488 + $0x290] sm:$0xf]
                  %655 = vst [vmem:[%s489 + $0x148] sm:$0xf] %v654
                  %v656 = vld [vmem:[%s488 + $0x298] sm:$0xf]
                  %657 = vst [vmem:[%s489 + $0x14c] sm:$0xf] %v656
                  %v658 = vld [vmem:[%s488 + $0x2a0] sm:$0xf]
                  %659 = vst [vmem:[%s489 + $0x150] sm:$0xf] %v658
                  %v660 = vld [vmem:[%s488 + $0x2a8] sm:$0xf]
                  %661 = vst [vmem:[%s489 + $0x154] sm:$0xf] %v660
                  %v662 = vld [vmem:[%s488 + $0x2b0] sm:$0xf]
                  %663 = vst [vmem:[%s489 + $0x158] sm:$0xf] %v662
                  %v664 = vld [vmem:[%s488 + $0x2b8] sm:$0xf]
                  %665 = vst [vmem:[%s489 + $0x15c] sm:$0xf] %v664
                  %v666 = vld [vmem:[%s488 + $0x2c0] sm:$0xf]
                  %667 = vst [vmem:[%s489 + $0x160] sm:$0xf] %v666
                  %v668 = vld [vmem:[%s488 + $0x2c8] sm:$0xf]
                  %669 = vst [vmem:[%s489 + $0x164] sm:$0xf] %v668
                  %v670 = vld [vmem:[%s488 + $0x2d0] sm:$0xf]
                  %671 = vst [vmem:[%s489 + $0x168] sm:$0xf] %v670
                  %v672 = vld [vmem:[%s488 + $0x2d8] sm:$0xf]
                  %673 = vst [vmem:[%s489 + $0x16c] sm:$0xf] %v672
                  %v674 = vld [vmem:[%s488 + $0x2e0] sm:$0xf]
                  %675 = vst [vmem:[%s489 + $0x170] sm:$0xf] %v674
                  %v676 = vld [vmem:[%s488 + $0x2e8] sm:$0xf]
                  %677 = vst [vmem:[%s489 + $0x174] sm:$0xf] %v676
                  %v678 = vld [vmem:[%s488 + $0x2f0] sm:$0xf]
                  %679 = vst [vmem:[%s489 + $0x178] sm:$0xf] %v678
                  %v680 = vld [vmem:[%s488 + $0x2f8] sm:$0xf]
                  %681 = vst [vmem:[%s489 + $0x17c] sm:$0xf] %v680
                  %v682 = vld [vmem:[%s488 + $0x300] sm:$0xf]
                  %683 = vst [vmem:[%s489 + $0x180] sm:$0xf] %v682
                  %v684 = vld [vmem:[%s488 + $0x308] sm:$0xf]
                  %685 = vst [vmem:[%s489 + $0x184] sm:$0xf] %v684
                  %v686 = vld [vmem:[%s488 + $0x310] sm:$0xf]
                  %687 = vst [vmem:[%s489 + $0x188] sm:$0xf] %v686
                  %v688 = vld [vmem:[%s488 + $0x318] sm:$0xf]
                  %689 = vst [vmem:[%s489 + $0x18c] sm:$0xf] %v688
                  %v690 = vld [vmem:[%s488 + $0x320] sm:$0xf]
                  %691 = vst [vmem:[%s489 + $0x190] sm:$0xf] %v690
                  %v692 = vld [vmem:[%s488 + $0x328] sm:$0xf]
                  %693 = vst [vmem:[%s489 + $0x194] sm:$0xf] %v692
                  %v694 = vld [vmem:[%s488 + $0x330] sm:$0xf]
                  %695 = vst [vmem:[%s489 + $0x198] sm:$0xf] %v694
                  %v696 = vld [vmem:[%s488 + $0x338] sm:$0xf]
                  %697 = vst [vmem:[%s489 + $0x19c] sm:$0xf] %v696
                  %v698 = vld [vmem:[%s488 + $0x340] sm:$0xf]
                  %699 = vst [vmem:[%s489 + $0x1a0] sm:$0xf] %v698
                  %v700 = vld [vmem:[%s488 + $0x348] sm:$0xf]
                  %701 = vst [vmem:[%s489 + $0x1a4] sm:$0xf] %v700
                  %v702 = vld [vmem:[%s488 + $0x350] sm:$0xf]
                  %703 = vst [vmem:[%s489 + $0x1a8] sm:$0xf] %v702
                  %v704 = vld [vmem:[%s488 + $0x358] sm:$0xf]
                  %705 = vst [vmem:[%s489 + $0x1ac] sm:$0xf] %v704
                  %v706 = vld [vmem:[%s488 + $0x360] sm:$0xf]
                  %707 = vst [vmem:[%s489 + $0x1b0] sm:$0xf] %v706
                  %v708 = vld [vmem:[%s488 + $0x368] sm:$0xf]
                  %709 = vst [vmem:[%s489 + $0x1b4] sm:$0xf] %v708
                  %v710 = vld [vmem:[%s488 + $0x370] sm:$0xf]
                  %711 = vst [vmem:[%s489 + $0x1b8] sm:$0xf] %v710
                  %v712 = vld [vmem:[%s488 + $0x378] sm:$0xf]
                  %713 = vst [vmem:[%s489 + $0x1bc] sm:$0xf] %v712
                  %v714 = vld [vmem:[%s488 + $0x380] sm:$0xf]
                  %715 = vst [vmem:[%s489 + $0x1c0] sm:$0xf] %v714
                  %v716 = vld [vmem:[%s488 + $0x388] sm:$0xf]
                  %717 = vst [vmem:[%s489 + $0x1c4] sm:$0xf] %v716
                  %v718 = vld [vmem:[%s488 + $0x390] sm:$0xf]
                  %719 = vst [vmem:[%s489 + $0x1c8] sm:$0xf] %v718
                  %v720 = vld [vmem:[%s488 + $0x398] sm:$0xf]
                  %721 = vst [vmem:[%s489 + $0x1cc] sm:$0xf] %v720
                  %v722 = vld [vmem:[%s488 + $0x3a0] sm:$0xf]
                  %723 = vst [vmem:[%s489 + $0x1d0] sm:$0xf] %v722
                  %v724 = vld [vmem:[%s488 + $0x3a8] sm:$0xf]
                  %725 = vst [vmem:[%s489 + $0x1d4] sm:$0xf] %v724
                  %v726 = vld [vmem:[%s488 + $0x3b0] sm:$0xf]
                  %727 = vst [vmem:[%s489 + $0x1d8] sm:$0xf] %v726
                  %v728 = vld [vmem:[%s488 + $0x3b8] sm:$0xf]
                  %729 = vst [vmem:[%s489 + $0x1dc] sm:$0xf] %v728
                  %v730 = vld [vmem:[%s488 + $0x3c0] sm:$0xf]
                  %731 = vst [vmem:[%s489 + $0x1e0] sm:$0xf] %v730
                  %v732 = vld [vmem:[%s488 + $0x3c8] sm:$0xf]
                  %733 = vst [vmem:[%s489 + $0x1e4] sm:$0xf] %v732
                  %v734 = vld [vmem:[%s488 + $0x3d0] sm:$0xf]
                  %735 = vst [vmem:[%s489 + $0x1e8] sm:$0xf] %v734
                  %v736 = vld [vmem:[%s488 + $0x3d8] sm:$0xf]
                  %737 = vst [vmem:[%s489 + $0x1ec] sm:$0xf] %v736
                  %v738 = vld [vmem:[%s488 + $0x3e0] sm:$0xf]
                  %739 = vst [vmem:[%s489 + $0x1f0] sm:$0xf] %v738
                  %v740 = vld [vmem:[%s488 + $0x3e8] sm:$0xf]
                  %741 = vst [vmem:[%s489 + $0x1f4] sm:$0xf] %v740
                  %v742 = vld [vmem:[%s488 + $0x3f0] sm:$0xf]
                  %743 = vst [vmem:[%s489 + $0x1f8] sm:$0xf] %v742
                  %v744 = vld [vmem:[%s488 + $0x3f8] sm:$0xf]
                  %745 = vst [vmem:[%s489 + $0x1fc] sm:$0xf] %v744
                  %v746 = vld [vmem:[%s488 + $0x400] sm:$0xf]
                  %747 = vst [vmem:[%s489 + $0x200] sm:$0xf] %v746
                  %v748 = vld [vmem:[%s488 + $0x408] sm:$0xf]
                  %749 = vst [vmem:[%s489 + $0x204] sm:$0xf] %v748
                  %v750 = vld [vmem:[%s488 + $0x410] sm:$0xf]
                  %751 = vst [vmem:[%s489 + $0x208] sm:$0xf] %v750
                  %v752 = vld [vmem:[%s488 + $0x418] sm:$0xf]
                  %753 = vst [vmem:[%s489 + $0x20c] sm:$0xf] %v752
                  %v754 = vld [vmem:[%s488 + $0x420] sm:$0xf]
                  %755 = vst [vmem:[%s489 + $0x210] sm:$0xf] %v754
                  %v756 = vld [vmem:[%s488 + $0x428] sm:$0xf]
                  %757 = vst [vmem:[%s489 + $0x214] sm:$0xf] %v756
                  %v758 = vld [vmem:[%s488 + $0x430] sm:$0xf]
                  %759 = vst [vmem:[%s489 + $0x218] sm:$0xf] %v758
                  %v760 = vld [vmem:[%s488 + $0x438] sm:$0xf]
                  %761 = vst [vmem:[%s489 + $0x21c] sm:$0xf] %v760
                  %v762 = vld [vmem:[%s488 + $0x440] sm:$0xf]
                  %763 = vst [vmem:[%s489 + $0x220] sm:$0xf] %v762
                  %v764 = vld [vmem:[%s488 + $0x448] sm:$0xf]
                  %765 = vst [vmem:[%s489 + $0x224] sm:$0xf] %v764
                  %v766 = vld [vmem:[%s488 + $0x450] sm:$0xf]
                  %767 = vst [vmem:[%s489 + $0x228] sm:$0xf] %v766
                  %v768 = vld [vmem:[%s488 + $0x458] sm:$0xf]
                  %769 = vst [vmem:[%s489 + $0x22c] sm:$0xf] %v768
                  %v770 = vld [vmem:[%s488 + $0x460] sm:$0xf]
                  %771 = vst [vmem:[%s489 + $0x230] sm:$0xf] %v770
                  %v772 = vld [vmem:[%s488 + $0x468] sm:$0xf]
                  %773 = vst [vmem:[%s489 + $0x234] sm:$0xf] %v772
                  %v774 = vld [vmem:[%s488 + $0x470] sm:$0xf]
                  %775 = vst [vmem:[%s489 + $0x238] sm:$0xf] %v774
                  %v776 = vld [vmem:[%s488 + $0x478] sm:$0xf]
                  %777 = vst [vmem:[%s489 + $0x23c] sm:$0xf] %v776
                $region59: #{basic_conv2d.1} parent=46 // loop_footer
                  %s487 = sadd.s32 1, %s483
                $region60: #{basic_conv2d.1} parent=46 // loop_footer_branch
                  %482 = sbr.rel target = $region56
                $region61: #{basic_conv2d.1} parent=46 // loop_exit
                  _
              $region47: #{basic_conv2d.1} parent=31 // pred_fallthru
                _
            $region32: #{basic_conv2d.1} parent=27 // pred_fallthru
              _
            // Predicated region
            $region33: #{basic_conv2d.1} parent=27 // pred_check
              _
            $region34: #{basic_conv2d.1} parent=27 // pred_check_branch
              %173 = sbr.rel (0) target = $region36
            $region35: #{basic_conv2d.1} parent=27 // pred_region
              loop: start=0, step=1, limit=1
              $region37: #{basic_conv2d.1} parent=35 // loop_pre_header
                _
              $region38: #{basic_conv2d.1} parent=35 // loop_header
                %s176 = sphi 0, %s180
                %p177 = scmp.ge.s32.totalorder %s176, 1
                %s181 = sphi %s167, %s167
                %s182 = sphi %s165, %s165
              $region39: #{basic_conv2d.1} parent=35 // loop_header_branch
                %179 = sbr.rel (%p177) target = $region43
              $region40: #{basic_conv2d.1} parent=35 // loop_body
                %v183 = vld [vmem:[%s181] sm:$0xf]
                %184 = vst [vmem:[%s182] sm:$0xf] %v183
                %v185 = vld [vmem:[%s181 + $0x8] sm:$0xf]
                %186 = vst [vmem:[%s182 + $0x4] sm:$0xf] %v185
                %v187 = vld [vmem:[%s181 + $0x10] sm:$0xf]
                %188 = vst [vmem:[%s182 + $0x8] sm:$0xf] %v187
                %v189 = vld [vmem:[%s181 + $0x18] sm:$0xf]
                %190 = vst [vmem:[%s182 + $0xc] sm:$0xf] %v189
                %v191 = vld [vmem:[%s181 + $0x20] sm:$0xf]
                %192 = vst [vmem:[%s182 + $0x10] sm:$0xf] %v191
                %v193 = vld [vmem:[%s181 + $0x28] sm:$0xf]
                %194 = vst [vmem:[%s182 + $0x14] sm:$0xf] %v193
                %v195 = vld [vmem:[%s181 + $0x30] sm:$0xf]
                %196 = vst [vmem:[%s182 + $0x18] sm:$0xf] %v195
                %v197 = vld [vmem:[%s181 + $0x38] sm:$0xf]
                %198 = vst [vmem:[%s182 + $0x1c] sm:$0xf] %v197
                %v199 = vld [vmem:[%s181 + $0x40] sm:$0xf]
                %200 = vst [vmem:[%s182 + $0x20] sm:$0xf] %v199
                %v201 = vld [vmem:[%s181 + $0x48] sm:$0xf]
                %202 = vst [vmem:[%s182 + $0x24] sm:$0xf] %v201
                %v203 = vld [vmem:[%s181 + $0x50] sm:$0xf]
                %204 = vst [vmem:[%s182 + $0x28] sm:$0xf] %v203
                %v205 = vld [vmem:[%s181 + $0x58] sm:$0xf]
                %206 = vst [vmem:[%s182 + $0x2c] sm:$0xf] %v205
                %v207 = vld [vmem:[%s181 + $0x60] sm:$0xf]
                %208 = vst [vmem:[%s182 + $0x30] sm:$0xf] %v207
                %v209 = vld [vmem:[%s181 + $0x68] sm:$0xf]
                %210 = vst [vmem:[%s182 + $0x34] sm:$0xf] %v209
                %v211 = vld [vmem:[%s181 + $0x70] sm:$0xf]
                %212 = vst [vmem:[%s182 + $0x38] sm:$0xf] %v211
                %v213 = vld [vmem:[%s181 + $0x78] sm:$0xf]
                %214 = vst [vmem:[%s182 + $0x3c] sm:$0xf] %v213
                %v215 = vld [vmem:[%s181 + $0x80] sm:$0xf]
                %216 = vst [vmem:[%s182 + $0x40] sm:$0xf] %v215
                %v217 = vld [vmem:[%s181 + $0x88] sm:$0xf]
                %218 = vst [vmem:[%s182 + $0x44] sm:$0xf] %v217
                %v219 = vld [vmem:[%s181 + $0x90] sm:$0xf]
                %220 = vst [vmem:[%s182 + $0x48] sm:$0xf] %v219
                %v221 = vld [vmem:[%s181 + $0x98] sm:$0xf]
                %222 = vst [vmem:[%s182 + $0x4c] sm:$0xf] %v221
                %v223 = vld [vmem:[%s181 + $0xa0] sm:$0xf]
                %224 = vst [vmem:[%s182 + $0x50] sm:$0xf] %v223
                %v225 = vld [vmem:[%s181 + $0xa8] sm:$0xf]
                %226 = vst [vmem:[%s182 + $0x54] sm:$0xf] %v225
                %v227 = vld [vmem:[%s181 + $0xb0] sm:$0xf]
                %228 = vst [vmem:[%s182 + $0x58] sm:$0xf] %v227
                %v229 = vld [vmem:[%s181 + $0xb8] sm:$0xf]
                %230 = vst [vmem:[%s182 + $0x5c] sm:$0xf] %v229
                %v231 = vld [vmem:[%s181 + $0xc0] sm:$0xf]
                %232 = vst [vmem:[%s182 + $0x60] sm:$0xf] %v231
                %v233 = vld [vmem:[%s181 + $0xc8] sm:$0xf]
                %234 = vst [vmem:[%s182 + $0x64] sm:$0xf] %v233
                %v235 = vld [vmem:[%s181 + $0xd0] sm:$0xf]
                %236 = vst [vmem:[%s182 + $0x68] sm:$0xf] %v235
                %v237 = vld [vmem:[%s181 + $0xd8] sm:$0xf]
                %238 = vst [vmem:[%s182 + $0x6c] sm:$0xf] %v237
                %v239 = vld [vmem:[%s181 + $0xe0] sm:$0xf]
                %240 = vst [vmem:[%s182 + $0x70] sm:$0xf] %v239
                %v241 = vld [vmem:[%s181 + $0xe8] sm:$0xf]
                %242 = vst [vmem:[%s182 + $0x74] sm:$0xf] %v241
                %v243 = vld [vmem:[%s181 + $0xf0] sm:$0xf]
                %244 = vst [vmem:[%s182 + $0x78] sm:$0xf] %v243
                %v245 = vld [vmem:[%s181 + $0xf8] sm:$0xf]
                %246 = vst [vmem:[%s182 + $0x7c] sm:$0xf] %v245
                %v247 = vld [vmem:[%s181 + $0x100] sm:$0xf]
                %248 = vst [vmem:[%s182 + $0x80] sm:$0xf] %v247
                %v249 = vld [vmem:[%s181 + $0x108] sm:$0xf]
                %250 = vst [vmem:[%s182 + $0x84] sm:$0xf] %v249
                %v251 = vld [vmem:[%s181 + $0x110] sm:$0xf]
                %252 = vst [vmem:[%s182 + $0x88] sm:$0xf] %v251
                %v253 = vld [vmem:[%s181 + $0x118] sm:$0xf]
                %254 = vst [vmem:[%s182 + $0x8c] sm:$0xf] %v253
                %v255 = vld [vmem:[%s181 + $0x120] sm:$0xf]
                %256 = vst [vmem:[%s182 + $0x90] sm:$0xf] %v255
                %v257 = vld [vmem:[%s181 + $0x128] sm:$0xf]
                %258 = vst [vmem:[%s182 + $0x94] sm:$0xf] %v257
                %v259 = vld [vmem:[%s181 + $0x130] sm:$0xf]
                %260 = vst [vmem:[%s182 + $0x98] sm:$0xf] %v259
                %v261 = vld [vmem:[%s181 + $0x138] sm:$0xf]
                %262 = vst [vmem:[%s182 + $0x9c] sm:$0xf] %v261
                %v263 = vld [vmem:[%s181 + $0x140] sm:$0xf]
                %264 = vst [vmem:[%s182 + $0xa0] sm:$0xf] %v263
                %v265 = vld [vmem:[%s181 + $0x148] sm:$0xf]
                %266 = vst [vmem:[%s182 + $0xa4] sm:$0xf] %v265
                %v267 = vld [vmem:[%s181 + $0x150] sm:$0xf]
                %268 = vst [vmem:[%s182 + $0xa8] sm:$0xf] %v267
                %v269 = vld [vmem:[%s181 + $0x158] sm:$0xf]
                %270 = vst [vmem:[%s182 + $0xac] sm:$0xf] %v269
                %v271 = vld [vmem:[%s181 + $0x160] sm:$0xf]
                %272 = vst [vmem:[%s182 + $0xb0] sm:$0xf] %v271
                %v273 = vld [vmem:[%s181 + $0x168] sm:$0xf]
                %274 = vst [vmem:[%s182 + $0xb4] sm:$0xf] %v273
                %v275 = vld [vmem:[%s181 + $0x170] sm:$0xf]
                %276 = vst [vmem:[%s182 + $0xb8] sm:$0xf] %v275
                %v277 = vld [vmem:[%s181 + $0x178] sm:$0xf]
                %278 = vst [vmem:[%s182 + $0xbc] sm:$0xf] %v277
                %v279 = vld [vmem:[%s181 + $0x180] sm:$0xf]
                %280 = vst [vmem:[%s182 + $0xc0] sm:$0xf] %v279
                %v281 = vld [vmem:[%s181 + $0x188] sm:$0xf]
                %282 = vst [vmem:[%s182 + $0xc4] sm:$0xf] %v281
                %v283 = vld [vmem:[%s181 + $0x190] sm:$0xf]
                %284 = vst [vmem:[%s182 + $0xc8] sm:$0xf] %v283
                %v285 = vld [vmem:[%s181 + $0x198] sm:$0xf]
                %286 = vst [vmem:[%s182 + $0xcc] sm:$0xf] %v285
                %v287 = vld [vmem:[%s181 + $0x1a0] sm:$0xf]
                %288 = vst [vmem:[%s182 + $0xd0] sm:$0xf] %v287
                %v289 = vld [vmem:[%s181 + $0x1a8] sm:$0xf]
                %290 = vst [vmem:[%s182 + $0xd4] sm:$0xf] %v289
                %v291 = vld [vmem:[%s181 + $0x1b0] sm:$0xf]
                %292 = vst [vmem:[%s182 + $0xd8] sm:$0xf] %v291
                %v293 = vld [vmem:[%s181 + $0x1b8] sm:$0xf]
                %294 = vst [vmem:[%s182 + $0xdc] sm:$0xf] %v293
                %v295 = vld [vmem:[%s181 + $0x1c0] sm:$0xf]
                %296 = vst [vmem:[%s182 + $0xe0] sm:$0xf] %v295
                %v297 = vld [vmem:[%s181 + $0x1c8] sm:$0xf]
                %298 = vst [vmem:[%s182 + $0xe4] sm:$0xf] %v297
                %v299 = vld [vmem:[%s181 + $0x1d0] sm:$0xf]
                %300 = vst [vmem:[%s182 + $0xe8] sm:$0xf] %v299
                %v301 = vld [vmem:[%s181 + $0x1d8] sm:$0xf]
                %302 = vst [vmem:[%s182 + $0xec] sm:$0xf] %v301
                %v303 = vld [vmem:[%s181 + $0x1e0] sm:$0xf]
                %304 = vst [vmem:[%s182 + $0xf0] sm:$0xf] %v303
                %v305 = vld [vmem:[%s181 + $0x1e8] sm:$0xf]
                %306 = vst [vmem:[%s182 + $0xf4] sm:$0xf] %v305
                %v307 = vld [vmem:[%s181 + $0x1f0] sm:$0xf]
                %308 = vst [vmem:[%s182 + $0xf8] sm:$0xf] %v307
                %v309 = vld [vmem:[%s181 + $0x1f8] sm:$0xf]
                %310 = vst [vmem:[%s182 + $0xfc] sm:$0xf] %v309
                %v311 = vld [vmem:[%s181 + $0x200] sm:$0xf]
                %312 = vst [vmem:[%s182 + $0x100] sm:$0xf] %v311
                %v313 = vld [vmem:[%s181 + $0x208] sm:$0xf]
                %314 = vst [vmem:[%s182 + $0x104] sm:$0xf] %v313
                %v315 = vld [vmem:[%s181 + $0x210] sm:$0xf]
                %316 = vst [vmem:[%s182 + $0x108] sm:$0xf] %v315
                %v317 = vld [vmem:[%s181 + $0x218] sm:$0xf]
                %318 = vst [vmem:[%s182 + $0x10c] sm:$0xf] %v317
                %v319 = vld [vmem:[%s181 + $0x220] sm:$0xf]
                %320 = vst [vmem:[%s182 + $0x110] sm:$0xf] %v319
                %v321 = vld [vmem:[%s181 + $0x228] sm:$0xf]
                %322 = vst [vmem:[%s182 + $0x114] sm:$0xf] %v321
                %v323 = vld [vmem:[%s181 + $0x230] sm:$0xf]
                %324 = vst [vmem:[%s182 + $0x118] sm:$0xf] %v323
                %v325 = vld [vmem:[%s181 + $0x238] sm:$0xf]
                %326 = vst [vmem:[%s182 + $0x11c] sm:$0xf] %v325
                %v327 = vld [vmem:[%s181 + $0x240] sm:$0xf]
                %328 = vst [vmem:[%s182 + $0x120] sm:$0xf] %v327
                %v329 = vld [vmem:[%s181 + $0x248] sm:$0xf]
                %330 = vst [vmem:[%s182 + $0x124] sm:$0xf] %v329
                %v331 = vld [vmem:[%s181 + $0x250] sm:$0xf]
                %332 = vst [vmem:[%s182 + $0x128] sm:$0xf] %v331
                %v333 = vld [vmem:[%s181 + $0x258] sm:$0xf]
                %334 = vst [vmem:[%s182 + $0x12c] sm:$0xf] %v333
                %v335 = vld [vmem:[%s181 + $0x260] sm:$0xf]
                %336 = vst [vmem:[%s182 + $0x130] sm:$0xf] %v335
                %v337 = vld [vmem:[%s181 + $0x268] sm:$0xf]
                %338 = vst [vmem:[%s182 + $0x134] sm:$0xf] %v337
                %v339 = vld [vmem:[%s181 + $0x270] sm:$0xf]
                %340 = vst [vmem:[%s182 + $0x138] sm:$0xf] %v339
                %v341 = vld [vmem:[%s181 + $0x278] sm:$0xf]
                %342 = vst [vmem:[%s182 + $0x13c] sm:$0xf] %v341
                %v343 = vld [vmem:[%s181 + $0x280] sm:$0xf]
                %344 = vst [vmem:[%s182 + $0x140] sm:$0xf] %v343
                %v345 = vld [vmem:[%s181 + $0x288] sm:$0xf]
                %346 = vst [vmem:[%s182 + $0x144] sm:$0xf] %v345
                %v347 = vld [vmem:[%s181 + $0x290] sm:$0xf]
                %348 = vst [vmem:[%s182 + $0x148] sm:$0xf] %v347
                %v349 = vld [vmem:[%s181 + $0x298] sm:$0xf]
                %350 = vst [vmem:[%s182 + $0x14c] sm:$0xf] %v349
                %v351 = vld [vmem:[%s181 + $0x2a0] sm:$0xf]
                %352 = vst [vmem:[%s182 + $0x150] sm:$0xf] %v351
                %v353 = vld [vmem:[%s181 + $0x2a8] sm:$0xf]
                %354 = vst [vmem:[%s182 + $0x154] sm:$0xf] %v353
                %v355 = vld [vmem:[%s181 + $0x2b0] sm:$0xf]
                %356 = vst [vmem:[%s182 + $0x158] sm:$0xf] %v355
                %v357 = vld [vmem:[%s181 + $0x2b8] sm:$0xf]
                %358 = vst [vmem:[%s182 + $0x15c] sm:$0xf] %v357
                %v359 = vld [vmem:[%s181 + $0x2c0] sm:$0xf]
                %360 = vst [vmem:[%s182 + $0x160] sm:$0xf] %v359
                %v361 = vld [vmem:[%s181 + $0x2c8] sm:$0xf]
                %362 = vst [vmem:[%s182 + $0x164] sm:$0xf] %v361
                %v363 = vld [vmem:[%s181 + $0x2d0] sm:$0xf]
                %364 = vst [vmem:[%s182 + $0x168] sm:$0xf] %v363
                %v365 = vld [vmem:[%s181 + $0x2d8] sm:$0xf]
                %366 = vst [vmem:[%s182 + $0x16c] sm:$0xf] %v365
                %v367 = vld [vmem:[%s181 + $0x2e0] sm:$0xf]
                %368 = vst [vmem:[%s182 + $0x170] sm:$0xf] %v367
                %v369 = vld [vmem:[%s181 + $0x2e8] sm:$0xf]
                %370 = vst [vmem:[%s182 + $0x174] sm:$0xf] %v369
                %v371 = vld [vmem:[%s181 + $0x2f0] sm:$0xf]
                %372 = vst [vmem:[%s182 + $0x178] sm:$0xf] %v371
                %v373 = vld [vmem:[%s181 + $0x2f8] sm:$0xf]
                %374 = vst [vmem:[%s182 + $0x17c] sm:$0xf] %v373
                %v375 = vld [vmem:[%s181 + $0x300] sm:$0xf]
                %376 = vst [vmem:[%s182 + $0x180] sm:$0xf] %v375
                %v377 = vld [vmem:[%s181 + $0x308] sm:$0xf]
                %378 = vst [vmem:[%s182 + $0x184] sm:$0xf] %v377
                %v379 = vld [vmem:[%s181 + $0x310] sm:$0xf]
                %380 = vst [vmem:[%s182 + $0x188] sm:$0xf] %v379
                %v381 = vld [vmem:[%s181 + $0x318] sm:$0xf]
                %382 = vst [vmem:[%s182 + $0x18c] sm:$0xf] %v381
                %v383 = vld [vmem:[%s181 + $0x320] sm:$0xf]
                %384 = vst [vmem:[%s182 + $0x190] sm:$0xf] %v383
                %v385 = vld [vmem:[%s181 + $0x328] sm:$0xf]
                %386 = vst [vmem:[%s182 + $0x194] sm:$0xf] %v385
                %v387 = vld [vmem:[%s181 + $0x330] sm:$0xf]
                %388 = vst [vmem:[%s182 + $0x198] sm:$0xf] %v387
                %v389 = vld [vmem:[%s181 + $0x338] sm:$0xf]
                %390 = vst [vmem:[%s182 + $0x19c] sm:$0xf] %v389
                %v391 = vld [vmem:[%s181 + $0x340] sm:$0xf]
                %392 = vst [vmem:[%s182 + $0x1a0] sm:$0xf] %v391
                %v393 = vld [vmem:[%s181 + $0x348] sm:$0xf]
                %394 = vst [vmem:[%s182 + $0x1a4] sm:$0xf] %v393
                %v395 = vld [vmem:[%s181 + $0x350] sm:$0xf]
                %396 = vst [vmem:[%s182 + $0x1a8] sm:$0xf] %v395
                %v397 = vld [vmem:[%s181 + $0x358] sm:$0xf]
                %398 = vst [vmem:[%s182 + $0x1ac] sm:$0xf] %v397
                %v399 = vld [vmem:[%s181 + $0x360] sm:$0xf]
                %400 = vst [vmem:[%s182 + $0x1b0] sm:$0xf] %v399
                %v401 = vld [vmem:[%s181 + $0x368] sm:$0xf]
                %402 = vst [vmem:[%s182 + $0x1b4] sm:$0xf] %v401
                %v403 = vld [vmem:[%s181 + $0x370] sm:$0xf]
                %404 = vst [vmem:[%s182 + $0x1b8] sm:$0xf] %v403
                %v405 = vld [vmem:[%s181 + $0x378] sm:$0xf]
                %406 = vst [vmem:[%s182 + $0x1bc] sm:$0xf] %v405
                %v407 = vld [vmem:[%s181 + $0x380] sm:$0xf]
                %408 = vst [vmem:[%s182 + $0x1c0] sm:$0xf] %v407
                %v409 = vld [vmem:[%s181 + $0x388] sm:$0xf]
                %410 = vst [vmem:[%s182 + $0x1c4] sm:$0xf] %v409
                %v411 = vld [vmem:[%s181 + $0x390] sm:$0xf]
                %412 = vst [vmem:[%s182 + $0x1c8] sm:$0xf] %v411
                %v413 = vld [vmem:[%s181 + $0x398] sm:$0xf]
                %414 = vst [vmem:[%s182 + $0x1cc] sm:$0xf] %v413
                %v415 = vld [vmem:[%s181 + $0x3a0] sm:$0xf]
                %416 = vst [vmem:[%s182 + $0x1d0] sm:$0xf] %v415
                %v417 = vld [vmem:[%s181 + $0x3a8] sm:$0xf]
                %418 = vst [vmem:[%s182 + $0x1d4] sm:$0xf] %v417
                %v419 = vld [vmem:[%s181 + $0x3b0] sm:$0xf]
                %420 = vst [vmem:[%s182 + $0x1d8] sm:$0xf] %v419
                %v421 = vld [vmem:[%s181 + $0x3b8] sm:$0xf]
                %422 = vst [vmem:[%s182 + $0x1dc] sm:$0xf] %v421
                %v423 = vld [vmem:[%s181 + $0x3c0] sm:$0xf]
                %424 = vst [vmem:[%s182 + $0x1e0] sm:$0xf] %v423
                %v425 = vld [vmem:[%s181 + $0x3c8] sm:$0xf]
                %426 = vst [vmem:[%s182 + $0x1e4] sm:$0xf] %v425
                %v427 = vld [vmem:[%s181 + $0x3d0] sm:$0xf]
                %428 = vst [vmem:[%s182 + $0x1e8] sm:$0xf] %v427
                %v429 = vld [vmem:[%s181 + $0x3d8] sm:$0xf]
                %430 = vst [vmem:[%s182 + $0x1ec] sm:$0xf] %v429
                %v431 = vld [vmem:[%s181 + $0x3e0] sm:$0xf]
                %432 = vst [vmem:[%s182 + $0x1f0] sm:$0xf] %v431
                %v433 = vld [vmem:[%s181 + $0x3e8] sm:$0xf]
                %434 = vst [vmem:[%s182 + $0x1f4] sm:$0xf] %v433
                %v435 = vld [vmem:[%s181 + $0x3f0] sm:$0xf]
                %436 = vst [vmem:[%s182 + $0x1f8] sm:$0xf] %v435
                %v437 = vld [vmem:[%s181 + $0x3f8] sm:$0xf]
                %438 = vst [vmem:[%s182 + $0x1fc] sm:$0xf] %v437
                %v439 = vld [vmem:[%s181 + $0x400] sm:$0xf]
                %440 = vst [vmem:[%s182 + $0x200] sm:$0xf] %v439
                %v441 = vld [vmem:[%s181 + $0x408] sm:$0xf]
                %442 = vst [vmem:[%s182 + $0x204] sm:$0xf] %v441
                %v443 = vld [vmem:[%s181 + $0x410] sm:$0xf]
                %444 = vst [vmem:[%s182 + $0x208] sm:$0xf] %v443
                %v445 = vld [vmem:[%s181 + $0x418] sm:$0xf]
                %446 = vst [vmem:[%s182 + $0x20c] sm:$0xf] %v445
                %v447 = vld [vmem:[%s181 + $0x420] sm:$0xf]
                %448 = vst [vmem:[%s182 + $0x210] sm:$0xf] %v447
                %v449 = vld [vmem:[%s181 + $0x428] sm:$0xf]
                %450 = vst [vmem:[%s182 + $0x214] sm:$0xf] %v449
                %v451 = vld [vmem:[%s181 + $0x430] sm:$0xf]
                %452 = vst [vmem:[%s182 + $0x218] sm:$0xf] %v451
                %v453 = vld [vmem:[%s181 + $0x438] sm:$0xf]
                %454 = vst [vmem:[%s182 + $0x21c] sm:$0xf] %v453
                %v455 = vld [vmem:[%s181 + $0x440] sm:$0xf]
                %456 = vst [vmem:[%s182 + $0x220] sm:$0xf] %v455
                %v457 = vld [vmem:[%s181 + $0x448] sm:$0xf]
                %458 = vst [vmem:[%s182 + $0x224] sm:$0xf] %v457
                %v459 = vld [vmem:[%s181 + $0x450] sm:$0xf]
                %460 = vst [vmem:[%s182 + $0x228] sm:$0xf] %v459
                %v461 = vld [vmem:[%s181 + $0x458] sm:$0xf]
                %462 = vst [vmem:[%s182 + $0x22c] sm:$0xf] %v461
                %v463 = vld [vmem:[%s181 + $0x460] sm:$0xf]
                %464 = vst [vmem:[%s182 + $0x230] sm:$0xf] %v463
                %v465 = vld [vmem:[%s181 + $0x468] sm:$0xf]
                %466 = vst [vmem:[%s182 + $0x234] sm:$0xf] %v465
                %v467 = vld [vmem:[%s181 + $0x470] sm:$0xf]
                %468 = vst [vmem:[%s182 + $0x238] sm:$0xf] %v467
                %v469 = vld [vmem:[%s181 + $0x478] sm:$0xf]
                %470 = vst [vmem:[%s182 + $0x23c] sm:$0xf] %v469
              $region41: #{basic_conv2d.1} parent=35 // loop_footer
                %s180 = sadd.s32 1, %s176
              $region42: #{basic_conv2d.1} parent=35 // loop_footer_branch
                %175 = sbr.rel target = $region38
              $region43: #{basic_conv2d.1} parent=35 // loop_exit
                _
            $region36: #{basic_conv2d.1} parent=27 // pred_fallthru
              _
          $region28: #{basic_conv2d.1} parent=23 // pred_fallthru
            _
          %778 = vnop
        $region24: #{basic_conv2d.1} parent=15 // pred_fallthru
          _
        // Predicated region
        $region62: #{basic_conv2d.1} parent=15 // pred_check
          %p779 = pneg %p96
        $region63: #{basic_conv2d.1} parent=15 // pred_check_branch
          %781 = sbr.rel (%p779) target = $region65
        $region64: #{basic_conv2d.1} parent=15 // pred_region
          %p782 = scmp.lt.s32.totalorder %s20, 1
          %s783 = scalar_select %p782, %s20, 1
          %s784 = scalar_lea.vmem %s2, %s783
        $region65: #{basic_conv2d.1} parent=15 // pred_fallthru
          _
      $region16: #{basic_conv2d.1} parent=5 // pred_fallthru
        _
      %p785 = scmp.le.s32.totalorder 1, %s12
      %p786 = scmp.lt.s32.totalorder %s12, 5
      %p787 = pnand %p785, %p786
      %p788 = pneg %p787
      // Predicated region
      $region66: #{basic_conv2d.1} parent=5 // pred_check
        _
      $region67: #{basic_conv2d.1} parent=5 // pred_check_branch
        %790 = sbr.rel (%p787) target = $region69
      $region68: #{basic_conv2d.1} parent=5 // pred_region
        %s791 = ssub.s32 %s12, 1
        %s792 = sand.u32 %s63, 1
        %s793 = sand.u32 %s63, 1
        %s794 = smul.addr %s793, 576
        %s795 = scalar_lea.vmem [#allocation2], %s794
        // Predicated region
        $region70: #{basic_conv2d.1} parent=68 // pred_check
          %p796 = pneg %p76
        $region71: #{basic_conv2d.1} parent=68 // pred_check_branch
          %798 = sbr.rel (%p796) target = $region73
        $region72: #{basic_conv2d.1} parent=68 // pred_region
          _
        $region73: #{basic_conv2d.1} parent=68 // pred_fallthru
          _
        %s799 = smul.u32 4, %s21
        %p800 = scmp.lt.s32.totalorder %s799, 7
        %s801 = scalar_select %p800, %s799, 7
        %s802 = smul.addr %s801, 18
        %s803 = smul.addr %s802, 4
        %s804 = scalar_lea.vmem %s0, %s803
        %p805 = pneg %p50
        %p806 = pneg %p47
        %s807 = sand.u32 %s63, 1
        %s808 = sand.u32 %s63, 1
        %s809 = smul.addr %s808, 576
        %s810 = scalar_lea.vmem [#allocation2], %s809
        %p811 = pneg %p76
        %p812 = pneg %p73
        %p813 = scmp.lt.s32.totalorder %s22, 1
        %s814 = scalar_select %p813, %s22, 1
        %s815 = scalar_lea.vmem %s2, %s814
        %p816 = pneg %p102
        %p817 = pneg %p99
        %p818 = pneg %p130
        %p819 = pneg %p127
        %s820 = sand.u32 %s117, 1
        %s821 = scalar_lea.sflag [#allocation4], %s820
        %s822 = sand.u32 %s117, 1
        %s823 = smul.addr %s822, 64
        %s824 = scalar_lea.vmem [#allocation3], %s823
        %s825 = smul.u32 4, %s21
        %p826 = scmp.lt.s32.totalorder %s825, 7
        %s827 = scalar_select %p826, %s825, 7
        %s828 = smul.addr %s827, 18
        %s829 = smul.addr %s828, 4
        %s830 = scalar_lea.vmem %s0, %s829
        %s831 = smul.u32 4, %s21
        %p832 = scmp.lt.s32.totalorder %s22, 1
        %s833 = scalar_select %p832, %s22, 1
        %s834 = scalar_lea.vmem %s2, %s833
        %v836 = vld [vmem:[%s830] sm:$0xf]
        %v837 = vld [vmem:[%s830 + $0x8] sm:$0xf]
        %v838 = vld [vmem:[%s830 + $0x10] sm:$0xf]
        %v839 = vld [vmem:[%s830 + $0x18] sm:$0xf]
        %v840 = vld [vmem:[%s830 + $0x20] sm:$0xf]
        %v841 = vld [vmem:[%s830 + $0x28] sm:$0xf]
        %v842 = vld [vmem:[%s830 + $0x30] sm:$0xf]
        %v843 = vld [vmem:[%s830 + $0x38] sm:$0xf]
        %v844 = vld [vmem:[%s795] sm:$0xf]
        %v845 = vld [vmem:[%s795 + $0x4] sm:$0xf]
        %v846 = vld [vmem:[%s795 + $0x8] sm:$0xf]
        %v847 = vld [vmem:[%s795 + $0xc] sm:$0xf]
        %v848 = vld [vmem:[%s795 + $0x10] sm:$0xf]
        %v849 = vld [vmem:[%s795 + $0x14] sm:$0xf]
        %v850 = vld [vmem:[%s795 + $0x18] sm:$0xf]
        %v851 = vld [vmem:[%s795 + $0x1c] sm:$0xf]
        %v852 = vld [vmem:[%s795 + $0x20] sm:$0xf]
        %v853 = vld [vmem:[%s795 + $0x24] sm:$0xf]
        %v854 = vld [vmem:[%s795 + $0x28] sm:$0xf]
        %v855 = vld [vmem:[%s795 + $0x2c] sm:$0xf]
        %v856 = vld [vmem:[%s795 + $0x30] sm:$0xf]
        %v857 = vld [vmem:[%s795 + $0x34] sm:$0xf]
        %v858 = vld [vmem:[%s795 + $0x38] sm:$0xf]
        %v859 = vld [vmem:[%s795 + $0x3c] sm:$0xf]
        %s860 = scalar_lea.vmem %s830, 72
        %v861 = vld [vmem:[%s860] sm:$0xf]
        %v862 = vld [vmem:[%s860 + $0x8] sm:$0xf]
        %v863 = vld [vmem:[%s860 + $0x10] sm:$0xf]
        %v864 = vld [vmem:[%s860 + $0x18] sm:$0xf]
        %v865 = vld [vmem:[%s860 + $0x20] sm:$0xf]
        %v866 = vld [vmem:[%s860 + $0x28] sm:$0xf]
        %v867 = vld [vmem:[%s860 + $0x30] sm:$0xf]
        %v868 = vld [vmem:[%s860 + $0x38] sm:$0xf]
        %s869 = scalar_lea.vmem %s795, 64 [#allocation2]
        %v870 = vld [vmem:[%s869] sm:$0xf]
        %v871 = vld [vmem:[%s869 + $0x4] sm:$0xf]
        %v872 = vld [vmem:[%s869 + $0x8] sm:$0xf]
        %v873 = vld [vmem:[%s869 + $0xc] sm:$0xf]
        %v874 = vld [vmem:[%s869 + $0x10] sm:$0xf]
        %v875 = vld [vmem:[%s869 + $0x14] sm:$0xf]
        %v876 = vld [vmem:[%s869 + $0x18] sm:$0xf]
        %v877 = vld [vmem:[%s869 + $0x1c] sm:$0xf]
        %v878 = vld [vmem:[%s869 + $0x20] sm:$0xf]
        %v879 = vld [vmem:[%s869 + $0x24] sm:$0xf]
        %v880 = vld [vmem:[%s869 + $0x28] sm:$0xf]
        %v881 = vld [vmem:[%s869 + $0x2c] sm:$0xf]
        %v882 = vld [vmem:[%s869 + $0x30] sm:$0xf]
        %v883 = vld [vmem:[%s869 + $0x34] sm:$0xf]
        %v884 = vld [vmem:[%s869 + $0x38] sm:$0xf]
        %v885 = vld [vmem:[%s869 + $0x3c] sm:$0xf]
        %v894 = vunpack.c.l.b16 %v861
        %v895 = vunpack.c.l.b16 %v862
        %v896 = vunpack.c.l.b16 %v863
        %v897 = vunpack.c.l.b16 %v864
        %v898 = vunpack.c.l.b16 %v865
        %v899 = vunpack.c.l.b16 %v866
        %v900 = vunpack.c.l.b16 %v867
        %v901 = vunpack.c.l.b16 %v868
        %v902 = vpack.c.b16 %v895, %v894
        %v903 = vpack.c.b16 %v897, %v896
        %v904 = vpack.c.b16 %v899, %v898
        %v905 = vpack.c.b16 %v901, %v900
        %v926 = vunpack.c.l.b16 %v870
        %v927 = vunpack.c.l.b16 %v871
        %v928 = vunpack.c.l.b16 %v872
        %v929 = vunpack.c.l.b16 %v873
        %v930 = vunpack.c.l.b16 %v874
        %v931 = vunpack.c.l.b16 %v875
        %v932 = vunpack.c.l.b16 %v876
        %v933 = vunpack.c.l.b16 %v877
        %v934 = vunpack.c.l.b16 %v878
        %v935 = vunpack.c.l.b16 %v879
        %v936 = vunpack.c.l.b16 %v880
        %v937 = vunpack.c.l.b16 %v881
        %v938 = vunpack.c.l.b16 %v882
        %v939 = vunpack.c.l.b16 %v883
        %v940 = vunpack.c.l.b16 %v884
        %v941 = vunpack.c.l.b16 %v885
        %v942 = vpack.c.b16 %v927, %v926
        %v943 = vpack.c.b16 %v929, %v928
        %v944 = vpack.c.b16 %v931, %v930
        %v945 = vpack.c.b16 %v933, %v932
        %v946 = vpack.c.b16 %v935, %v934
        %v947 = vpack.c.b16 %v937, %v936
        %v948 = vpack.c.b16 %v939, %v938
        %v949 = vpack.c.b16 %v941, %v940
        %958 = vmatprep.subr.bf16.mxu0 0
        %959 = vmatpush1.bf16.msra.mxu0 %v942
        %960 = vmatprep.subr.bf16.mxu0 0
        %961 = vmatpush1.bf16.msra.mxu0 %v943
        %962 = vmatprep.subr.bf16.mxu0 0
        %963 = vmatpush1.bf16.msra.mxu0 %v944
        %964 = vmatprep.subr.bf16.mxu0 0
        %965 = vmatpush1.bf16.msra.mxu0 %v945
        %966 = vmatprep.subr.bf16.mxu0 0
        %967 = vmatpush1.bf16.msra.mxu0 %v946
        %968 = vmatprep.subr.bf16.mxu0 0
        %969 = vmatpush1.bf16.msra.mxu0 %v947
        %970 = vmatprep.subr.bf16.mxu0 0
        %971 = vmatpush1.bf16.msra.mxu0 %v948
        %972 = vmatprep.subr.bf16.mxu0 0
        %973 = vmatpush1.bf16.msra.mxu0 %v949
        %974 = vmatprep.subr.bf16.mxu0 0
        %975 = vmatpush1.bf16.msra.mxu0 0
        %976 = vmatprep.subr.bf16.mxu0 0
        %977 = vmatpush1.bf16.msra.mxu0 0
        %978 = vmatprep.subr.bf16.mxu0 0
        %979 = vmatpush1.bf16.msra.mxu0 0
        %980 = vmatprep.subr.bf16.mxu0 0
        %981 = vmatpush1.bf16.msra.mxu0 0
        %982 = vmatprep.subr.bf16.mxu0 0
        %983 = vmatpush1.bf16.msra.mxu0 0
        %984 = vmatprep.subr.bf16.mxu0 0
        %985 = vmatpush1.bf16.msra.mxu0 0
        %986 = vmatprep.subr.bf16.mxu0 0
        %987 = vmatpush1.bf16.msra.mxu0 0
        %988 = vmatprep.subr.bf16.mxu0 0
        %989 = vmatpush1.bf16.msra.mxu0 0
        %990 = vmatprep.mubr.bf16.mxu0 0
        %991 = vmatmul.mubr.bf16.gmra.mrb[0].mxu0 %v902
        %v992 = vpop.f32.mrb[0].mxu0
        %v993 = vadd.f32 0.0, %v992
        %v994 = vpop.f32.mrb[0].mxu0
        %v995 = vpop.f32.mrb[0].mxu0
        %v996 = vadd.f32 0.0, %v995
        %v997 = vpop.f32.mrb[0].mxu0
        %998 = vmatprep.mubr.bf16.mxu0 0
        %999 = vmatmul.mubr.bf16.gmra.mrb[0].mxu0 %v903
        %v1000 = vpop.f32.mrb[0].mxu0
        %v1001 = vadd.f32 0.0, %v1000
        %v1002 = vpop.f32.mrb[0].mxu0
        %v1003 = vpop.f32.mrb[0].mxu0
        %v1004 = vadd.f32 0.0, %v1003
        %v1005 = vpop.f32.mrb[0].mxu0
        %1006 = vmatprep.mubr.bf16.mxu0 0
        %1007 = vmatmul.mubr.bf16.gmra.mrb[0].mxu0 %v904
        %v1008 = vpop.f32.mrb[0].mxu0
        %v1009 = vadd.f32 0.0, %v1008
        %v1010 = vpop.f32.mrb[0].mxu0
        %v1011 = vpop.f32.mrb[0].mxu0
        %v1012 = vadd.f32 0.0, %v1011
        %v1013 = vpop.f32.mrb[0].mxu0
        %1014 = vmatprep.mubr.bf16.mxu0 0
        %1015 = vmatmul.mubr.bf16.gmra.mrb[0].mxu0 %v905
        %v1016 = vpop.f32.mrb[0].mxu0
        %v1017 = vadd.f32 0.0, %v1016
        %v1018 = vpop.f32.mrb[0].mxu0
        %v1019 = vpop.f32.mrb[0].mxu0
        %v1020 = vadd.f32 0.0, %v1019
        %v1021 = vpop.f32.mrb[0].mxu0
        %1022 = vdwg.mxu0
        %v1031 = vunpack.c.l.b16 %v836
        %v1032 = vunpack.c.l.b16 %v837
        %v1033 = vunpack.c.l.b16 %v838
        %v1034 = vunpack.c.l.b16 %v839
        %v1035 = vunpack.c.l.b16 %v840
        %v1036 = vunpack.c.l.b16 %v841
        %v1037 = vunpack.c.l.b16 %v842
        %v1038 = vunpack.c.l.b16 %v843
        %v1039 = vpack.c.b16 %v1032, %v1031
        %v1040 = vpack.c.b16 %v1034, %v1033
        %v1041 = vpack.c.b16 %v1036, %v1035
        %v1042 = vpack.c.b16 %v1038, %v1037
        %v1063 = vunpack.c.l.b16 %v844
        %v1064 = vunpack.c.l.b16 %v845
        %v1065 = vunpack.c.l.b16 %v846
        %v1066 = vunpack.c.l.b16 %v847
        %v1067 = vunpack.c.l.b16 %v848
        %v1068 = vunpack.c.l.b16 %v849
        %v1069 = vunpack.c.l.b16 %v850
        %v1070 = vunpack.c.l.b16 %v851
        %v1071 = vunpack.c.l.b16 %v852
        %v1072 = vunpack.c.l.b16 %v853
        %v1073 = vunpack.c.l.b16 %v854
        %v1074 = vunpack.c.l.b16 %v855
        %v1075 = vunpack.c.l.b16 %v856
        %v1076 = vunpack.c.l.b16 %v857
        %v1077 = vunpack.c.l.b16 %v858
        %v1078 = vunpack.c.l.b16 %v859
        %v1079 = vpack.c.b16 %v1064, %v1063
        %v1080 = vpack.c.b16 %v1066, %v1065
        %v1081 = vpack.c.b16 %v1068, %v1067
        %v1082 = vpack.c.b16 %v1070, %v1069
        %v1083 = vpack.c.b16 %v1072, %v1071
        %v1084 = vpack.c.b16 %v1074, %v1073
        %v1085 = vpack.c.b16 %v1076, %v1075
        %v1086 = vpack.c.b16 %v1078, %v1077
        %1095 = vmatprep.subr.bf16.mxu0 0
        %1096 = vmatpush1.bf16.msra.mxu0 %v1079
        %1097 = vmatprep.subr.bf16.mxu0 0
        %1098 = vmatpush1.bf16.msra.mxu0 %v1080
        %1099 = vmatprep.subr.bf16.mxu0 0
        %1100 = vmatpush1.bf16.msra.mxu0 %v1081
        %1101 = vmatprep.subr.bf16.mxu0 0
        %1102 = vmatpush1.bf16.msra.mxu0 %v1082
        %1103 = vmatprep.subr.bf16.mxu0 0
        %1104 = vmatpush1.bf16.msra.mxu0 %v1083
        %1105 = vmatprep.subr.bf16.mxu0 0
        %1106 = vmatpush1.bf16.msra.mxu0 %v1084
        %1107 = vmatprep.subr.bf16.mxu0 0
        %1108 = vmatpush1.bf16.msra.mxu0 %v1085
        %1109 = vmatprep.subr.bf16.mxu0 0
        %1110 = vmatpush1.bf16.msra.mxu0 %v1086
        %1111 = vmatprep.subr.bf16.mxu0 0
        %1112 = vmatpush1.bf16.msra.mxu0 0
        %1113 = vmatprep.subr.bf16.mxu0 0
        %1114 = vmatpush1.bf16.msra.mxu0 0
        %1115 = vmatprep.subr.bf16.mxu0 0
        %1116 = vmatpush1.bf16.msra.mxu0 0
        %1117 = vmatprep.subr.bf16.mxu0 0
        %1118 = vmatpush1.bf16.msra.mxu0 0
        %1119 = vmatprep.subr.bf16.mxu0 0
        %1120 = vmatpush1.bf16.msra.mxu0 0
        %1121 = vmatprep.subr.bf16.mxu0 0
        %1122 = vmatpush1.bf16.msra.mxu0 0
        %1123 = vmatprep.subr.bf16.mxu0 0
        %1124 = vmatpush1.bf16.msra.mxu0 0
        %1125 = vmatprep.subr.bf16.mxu0 0
        %1126 = vmatpush1.bf16.msra.mxu0 0
        %1127 = vmatprep.mubr.bf16.mxu0 0
        %1128 = vmatmul.mubr.bf16.gmra.mrb[0].mxu0 %v1039
        %v1129 = vpop.f32.mrb[0].mxu0
        %v1130 = vadd.f32 %v993, %v1129
        %v1131 = vpop.f32.mrb[0].mxu0
        %v1132 = vpop.f32.mrb[0].mxu0
        %v1133 = vadd.f32 %v996, %v1132
        %v1134 = vpop.f32.mrb[0].mxu0
        %1135 = vmatprep.mubr.bf16.mxu0 0
        %1136 = vmatmul.mubr.bf16.gmra.mrb[0].mxu0 %v1040
        %v1137 = vpop.f32.mrb[0].mxu0
        %v1138 = vadd.f32 %v1001, %v1137
        %v1139 = vpop.f32.mrb[0].mxu0
        %v1140 = vpop.f32.mrb[0].mxu0
        %v1141 = vadd.f32 %v1004, %v1140
        %v1142 = vpop.f32.mrb[0].mxu0
        %1143 = vmatprep.mubr.bf16.mxu0 0
        %1144 = vmatmul.mubr.bf16.gmra.mrb[0].mxu0 %v1041
        %v1145 = vpop.f32.mrb[0].mxu0
        %v1146 = vadd.f32 %v1009, %v1145
        %v1147 = vpop.f32.mrb[0].mxu0
        %v1148 = vpop.f32.mrb[0].mxu0
        %v1149 = vadd.f32 %v1012, %v1148
        %v1150 = vpop.f32.mrb[0].mxu0
        %1151 = vmatprep.mubr.bf16.mxu0 0
        %1152 = vmatmul.mubr.bf16.gmra.mrb[0].mxu0 %v1042
        %v1153 = vpop.f32.mrb[0].mxu0
        %v1154 = vadd.f32 %v1017, %v1153
        %v1155 = vpop.f32.mrb[0].mxu0
        %v1156 = vpop.f32.mrb[0].mxu0
        %v1157 = vadd.f32 %v1020, %v1156
        %v1158 = vpop.f32.mrb[0].mxu0
        %1159 = vdwg.mxu0
        %v1160 = vld [vmem:[%s830] sm:$0xf]
        %v1161 = vld [vmem:[%s830 + $0x4] sm:$0x1]
        %v1162 = vld [vmem:[%s830 + $0x8] sm:$0xf]
        %v1163 = vld [vmem:[%s830 + $0xc] sm:$0x1]
        %v1164 = vld [vmem:[%s830 + $0x10] sm:$0xf]
        %v1165 = vld [vmem:[%s830 + $0x14] sm:$0x1]
        %v1166 = vld [vmem:[%s830 + $0x18] sm:$0xf]
        %v1167 = vld [vmem:[%s830 + $0x1c] sm:$0x1]
        %v1168 = vld [vmem:[%s830 + $0x20] sm:$0xf]
        %v1169 = vld [vmem:[%s830 + $0x24] sm:$0x1]
        %v1170 = vld [vmem:[%s830 + $0x28] sm:$0xf]
        %v1171 = vld [vmem:[%s830 + $0x2c] sm:$0x1]
        %v1172 = vld [vmem:[%s830 + $0x30] sm:$0xf]
        %v1173 = vld [vmem:[%s830 + $0x34] sm:$0x1]
        %v1174 = vld [vmem:[%s830 + $0x38] sm:$0xf]
        %v1175 = vld [vmem:[%s830 + $0x3c] sm:$0x1]
        %vm1176 = vsmask.f32 3328
        %vm1177 = vsmask.f32 7440
        %vm1178 = vmor %vm1176, %vm1177
        %v1180 = vshrl.u32 %v1160, 16
        %v1182 = vrot.slane %v1180, 4
        %v1183 = vshll.u32 %v1160, 16
        %v1185 = vrot.slane %v1183, 5
        %v1186 = vor.u32 %v1182, %v1185
        %v1187 = vrot.slane %v1186, 4
        %v1189 = vshll.u32 %v1161, 16
        %v1191 = vrot.slane %v1189, 5
        %v1192 = vsel %vm1178, %v1187, %v1191
        %v1194 = vshrl.u32 %v1162, 16
        %v1196 = vrot.slane %v1194, 4
        %v1197 = vshll.u32 %v1162, 16
        %v1199 = vrot.slane %v1197, 5
        %v1200 = vor.u32 %v1196, %v1199
        %v1201 = vrot.slane %v1200, 4
        %v1203 = vshll.u32 %v1163, 16
        %v1205 = vrot.slane %v1203, 5
        %v1206 = vsel %vm1178, %v1201, %v1205
        %v1208 = vshrl.u32 %v1164, 16
        %v1210 = vrot.slane %v1208, 4
        %v1211 = vshll.u32 %v1164, 16
        %v1213 = vrot.slane %v1211, 5
        %v1214 = vor.u32 %v1210, %v1213
        %v1215 = vrot.slane %v1214, 4
        %v1217 = vshll.u32 %v1165, 16
        %v1219 = vrot.slane %v1217, 5
        %v1220 = vsel %vm1178, %v1215, %v1219
        %v1222 = vshrl.u32 %v1166, 16
        %v1224 = vrot.slane %v1222, 4
        %v1225 = vshll.u32 %v1166, 16
        %v1227 = vrot.slane %v1225, 5
        %v1228 = vor.u32 %v1224, %v1227
        %v1229 = vrot.slane %v1228, 4
        %v1231 = vshll.u32 %v1167, 16
        %v1233 = vrot.slane %v1231, 5
        %v1234 = vsel %vm1178, %v1229, %v1233
        %v1236 = vshrl.u32 %v1168, 16
        %v1238 = vrot.slane %v1236, 4
        %v1239 = vshll.u32 %v1168, 16
        %v1241 = vrot.slane %v1239, 5
        %v1242 = vor.u32 %v1238, %v1241
        %v1243 = vrot.slane %v1242, 4
        %v1245 = vshll.u32 %v1169, 16
        %v1247 = vrot.slane %v1245, 5
        %v1248 = vsel %vm1178, %v1243, %v1247
        %v1250 = vshrl.u32 %v1170, 16
        %v1252 = vrot.slane %v1250, 4
        %v1253 = vshll.u32 %v1170, 16
        %v1255 = vrot.slane %v1253, 5
        %v1256 = vor.u32 %v1252, %v1255
        %v1257 = vrot.slane %v1256, 4
        %v1259 = vshll.u32 %v1171, 16
        %v1261 = vrot.slane %v1259, 5
        %v1262 = vsel %vm1178, %v1257, %v1261
        %v1264 = vshrl.u32 %v1172, 16
        %v1266 = vrot.slane %v1264, 4
        %v1267 = vshll.u32 %v1172, 16
        %v1269 = vrot.slane %v1267, 5
        %v1270 = vor.u32 %v1266, %v1269
        %v1271 = vrot.slane %v1270, 4
        %v1273 = vshll.u32 %v1173, 16
        %v1275 = vrot.slane %v1273, 5
        %v1276 = vsel %vm1178, %v1271, %v1275
        %v1278 = vshrl.u32 %v1174, 16
        %v1280 = vrot.slane %v1278, 4
        %v1281 = vshll.u32 %v1174, 16
        %v1283 = vrot.slane %v1281, 5
        %v1284 = vor.u32 %v1280, %v1283
        %v1285 = vrot.slane %v1284, 4
        %v1287 = vshll.u32 %v1175, 16
        %v1289 = vrot.slane %v1287, 5
        %v1290 = vsel %vm1178, %v1285, %v1289
        %s1291 = scalar_lea.vmem %s795, 128 [#allocation2]
        %v1292 = vld [vmem:[%s1291] sm:$0xf]
        %v1293 = vld [vmem:[%s1291 + $0x4] sm:$0xf]
        %v1294 = vld [vmem:[%s1291 + $0x8] sm:$0xf]
        %v1295 = vld [vmem:[%s1291 + $0xc] sm:$0xf]
        %v1296 = vld [vmem:[%s1291 + $0x10] sm:$0xf]
        %v1297 = vld [vmem:[%s1291 + $0x14] sm:$0xf]
        %v1298 = vld [vmem:[%s1291 + $0x18] sm:$0xf]
        %v1299 = vld [vmem:[%s1291 + $0x1c] sm:$0xf]
        %v1300 = vld [vmem:[%s1291 + $0x20] sm:$0xf]
        %v1301 = vld [vmem:[%s1291 + $0x24] sm:$0xf]
        %v1302 = vld [vmem:[%s1291 + $0x28] sm:$0xf]
        %v1303 = vld [vmem:[%s1291 + $0x2c] sm:$0xf]
        %v1304 = vld [vmem:[%s1291 + $0x30] sm:$0xf]
        %v1305 = vld [vmem:[%s1291 + $0x34] sm:$0xf]
        %v1306 = vld [vmem:[%s1291 + $0x38] sm:$0xf]
        %v1307 = vld [vmem:[%s1291 + $0x3c] sm:$0xf]
        %v1308 = vunpack.c.l.b16 %v1192
        %v1309 = vunpack.c.l.b16 %v1206
        %v1310 = vunpack.c.l.b16 %v1220
        %v1311 = vunpack.c.l.b16 %v1234
        %v1312 = vunpack.c.l.b16 %v1248
        %v1313 = vunpack.c.l.b16 %v1262
        %v1314 = vunpack.c.l.b16 %v1276
        %v1315 = vunpack.c.l.b16 %v1290
        %v1316 = vpack.c.b16 %v1309, %v1308
        %v1317 = vpack.c.b16 %v1311, %v1310
        %v1318 = vpack.c.b16 %v1313, %v1312
        %v1319 = vpack.c.b16 %v1315, %v1314
        %v1340 = vunpack.c.l.b16 %v1292
        %v1341 = vunpack.c.l.b16 %v1293
        %v1342 = vunpack.c.l.b16 %v1294
        %v1343 = vunpack.c.l.b16 %v1295
        %v1344 = vunpack.c.l.b16 %v1296
        %v1345 = vunpack.c.l.b16 %v1297
        %v1346 = vunpack.c.l.b16 %v1298
        %v1347 = vunpack.c.l.b16 %v1299
        %v1348 = vunpack.c.l.b16 %v1300
        %v1349 = vunpack.c.l.b16 %v1301
        %v1350 = vunpack.c.l.b16 %v1302
        %v1351 = vunpack.c.l.b16 %v1303
        %v1352 = vunpack.c.l.b16 %v1304
        %v1353 = vunpack.c.l.b16 %v1305
        %v1354 = vunpack.c.l.b16 %v1306
        %v1355 = vunpack.c.l.b16 %v1307
        %v1356 = vpack.c.b16 %v1341, %v1340
        %v1357 = vpack.c.b16 %v1343, %v1342
        %v1358 = vpack.c.b16 %v1345, %v1344
        %v1359 = vpack.c.b16 %v1347, %v1346
        %v1360 = vpack.c.b16 %v1349, %v1348
        %v1361 = vpack.c.b16 %v1351, %v1350
        %v1362 = vpack.c.b16 %v1353, %v1352
        %v1363 = vpack.c.b16 %v1355, %v1354
        %1372 = vmatprep.subr.bf16.mxu0 0
        %1373 = vmatpush1.bf16.msra.mxu0 %v1356
        %1374 = vmatprep.subr.bf16.mxu0 0
        %1375 = vmatpush1.bf16.msra.mxu0 %v1357
        %1376 = vmatprep.subr.bf16.mxu0 0
        %1377 = vmatpush1.bf16.msra.mxu0 %v1358
        %1378 = vmatprep.subr.bf16.mxu0 0
        %1379 = vmatpush1.bf16.msra.mxu0 %v1359
        %1380 = vmatprep.subr.bf16.mxu0 0
        %1381 = vmatpush1.bf16.msra.mxu0 %v1360
        %1382 = vmatprep.subr.bf16.mxu0 0
        %1383 = vmatpush1.bf16.msra.mxu0 %v1361
        %1384 = vmatprep.subr.bf16.mxu0 0
        %1385 = vmatpush1.bf16.msra.mxu0 %v1362
        %1386 = vmatprep.subr.bf16.mxu0 0
        %1387 = vmatpush1.bf16.msra.mxu0 %v1363
        %1388 = vmatprep.subr.bf16.mxu0 0
        %1389 = vmatpush1.bf16.msra.mxu0 0
        %1390 = vmatprep.subr.bf16.mxu0 0
        %1391 = vmatpush1.bf16.msra.mxu0 0
        %1392 = vmatprep.subr.bf16.mxu0 0
        %1393 = vmatpush1.bf16.msra.mxu0 0
        %1394 = vmatprep.subr.bf16.mxu0 0
        %1395 = vmatpush1.bf16.msra.mxu0 0
        %1396 = vmatprep.subr.bf16.mxu0 0
        %1397 = vmatpush1.bf16.msra.mxu0 0
        %1398 = vmatprep.subr.bf16.mxu0 0
        %1399 = vmatpush1.bf16.msra.mxu0 0
        %1400 = vmatprep.subr.bf16.mxu0 0
        %1401 = vmatpush1.bf16.msra.mxu0 0
        %1402 = vmatprep.subr.bf16.mxu0 0
        %1403 = vmatpush1.bf16.msra.mxu0 0
        %1404 = vmatprep.mubr.bf16.mxu0 0
        %1405 = vmatmul.mubr.bf16.gmra.mrb[0].mxu0 %v1316
        %v1406 = vpop.f32.mrb[0].mxu0
        %v1407 = vadd.f32 0.0, %v1406
        %v1408 = vpop.f32.mrb[0].mxu0
        %v1409 = vpop.f32.mrb[0].mxu0
        %v1410 = vadd.f32 0.0, %v1409
        %v1411 = vpop.f32.mrb[0].mxu0
        %1412 = vmatprep.mubr.bf16.mxu0 0
        %1413 = vmatmul.mubr.bf16.gmra.mrb[0].mxu0 %v1317
        %v1414 = vpop.f32.mrb[0].mxu0
        %v1415 = vadd.f32 0.0, %v1414
        %v1416 = vpop.f32.mrb[0].mxu0
        %v1417 = vpop.f32.mrb[0].mxu0
        %v1418 = vadd.f32 0.0, %v1417
        %v1419 = vpop.f32.mrb[0].mxu0
        %1420 = vmatprep.mubr.bf16.mxu0 0
        %1421 = vmatmul.mubr.bf16.gmra.mrb[0].mxu0 %v1318
        %v1422 = vpop.f32.mrb[0].mxu0
        %v1423 = vadd.f32 0.0, %v1422
        %v1424 = vpop.f32.mrb[0].mxu0
        %v1425 = vpop.f32.mrb[0].mxu0
        %v1426 = vadd.f32 0.0, %v1425
        %v1427 = vpop.f32.mrb[0].mxu0
        %1428 = vmatprep.mubr.bf16.mxu0 0
        %1429 = vmatmul.mubr.bf16.gmra.mrb[0].mxu0 %v1319
        %v1430 = vpop.f32.mrb[0].mxu0
        %v1431 = vadd.f32 0.0, %v1430
        %v1432 = vpop.f32.mrb[0].mxu0
        %v1433 = vpop.f32.mrb[0].mxu0
        %v1434 = vadd.f32 0.0, %v1433
        %v1435 = vpop.f32.mrb[0].mxu0
        %1436 = vdwg.mxu0
        %v1437 = vadd.f32 %v1130, %v1407
        %v1438 = vadd.f32 %v1133, %v1410
        %v1439 = vadd.f32 %v1138, %v1415
        %v1440 = vadd.f32 %v1141, %v1418
        %v1441 = vadd.f32 %v1146, %v1423
        %v1442 = vadd.f32 %v1149, %v1426
        %v1443 = vadd.f32 %v1154, %v1431
        %v1444 = vadd.f32 %v1157, %v1434
        %s1445 = scalar_lea.vmem %s830, 144
        %v1446 = vld [vmem:[%s1445] sm:$0xf]
        %v1447 = vld [vmem:[%s1445 + $0x8] sm:$0xf]
        %v1448 = vld [vmem:[%s1445 + $0x10] sm:$0xf]
        %v1449 = vld [vmem:[%s1445 + $0x18] sm:$0xf]
        %v1450 = vld [vmem:[%s1445 + $0x20] sm:$0xf]
        %v1451 = vld [vmem:[%s1445 + $0x28] sm:$0xf]
        %v1452 = vld [vmem:[%s1445 + $0x30] sm:$0xf]
        %v1453 = vld [vmem:[%s1445 + $0x38] sm:$0xf]
        %s1454 = scalar_lea.vmem %s795, 192 [#allocation2]
        %v1455 = vld [vmem:[%s1454] sm:$0xf]
        %v1456 = vld [vmem:[%s1454 + $0x4] sm:$0xf]
        %v1457 = vld [vmem:[%s1454 + $0x8] sm:$0xf]
        %v1458 = vld [vmem:[%s1454 + $0xc] sm:$0xf]
        %v1459 = vld [vmem:[%s1454 + $0x10] sm:$0xf]
        %v1460 = vld [vmem:[%s1454 + $0x14] sm:$0xf]
        %v1461 = vld [vmem:[%s1454 + $0x18] sm:$0xf]
        %v1462 = vld [vmem:[%s1454 + $0x1c] sm:$0xf]
        %v1463 = vld [vmem:[%s1454 + $0x20] sm:$0xf]
        %v1464 = vld [vmem:[%s1454 + $0x24] sm:$0xf]
        %v1465 = vld [vmem:[%s1454 + $0x28] sm:$0xf]
        %v1466 = vld [vmem:[%s1454 + $0x2c] sm:$0xf]
        %v1467 = vld [vmem:[%s1454 + $0x30] sm:$0xf]
        %v1468 = vld [vmem:[%s1454 + $0x34] sm:$0xf]
        %v1469 = vld [vmem:[%s1454 + $0x38] sm:$0xf]
        %v1470 = vld [vmem:[%s1454 + $0x3c] sm:$0xf]
        %v1479 = vunpack.c.l.b16 %v1446
        %v1480 = vunpack.c.l.b16 %v1447
        %v1481 = vunpack.c.l.b16 %v1448
        %v1482 = vunpack.c.l.b16 %v1449
        %v1483 = vunpack.c.l.b16 %v1450
        %v1484 = vunpack.c.l.b16 %v1451
        %v1485 = vunpack.c.l.b16 %v1452
        %v1486 = vunpack.c.l.b16 %v1453
        %v1487 = vpack.c.b16 %v1480, %v1479
        %v1488 = vpack.c.b16 %v1482, %v1481
        %v1489 = vpack.c.b16 %v1484, %v1483
        %v1490 = vpack.c.b16 %v1486, %v1485
        %v1511 = vunpack.c.l.b16 %v1455
        %v1512 = vunpack.c.l.b16 %v1456
        %v1513 = vunpack.c.l.b16 %v1457
        %v1514 = vunpack.c.l.b16 %v1458
        %v1515 = vunpack.c.l.b16 %v1459
        %v1516 = vunpack.c.l.b16 %v1460
        %v1517 = vunpack.c.l.b16 %v1461
        %v1518 = vunpack.c.l.b16 %v1462
        %v1519 = vunpack.c.l.b16 %v1463
        %v1520 = vunpack.c.l.b16 %v1464
        %v1521 = vunpack.c.l.b16 %v1465
        %v1522 = vunpack.c.l.b16 %v1466
        %v1523 = vunpack.c.l.b16 %v1467
        %v1524 = vunpack.c.l.b16 %v1468
        %v1525 = vunpack.c.l.b16 %v1469
        %v1526 = vunpack.c.l.b16 %v1470
        %v1527 = vpack.c.b16 %v1512, %v1511
        %v1528 = vpack.c.b16 %v1514, %v1513
        %v1529 = vpack.c.b16 %v1516, %v1515
        %v1530 = vpack.c.b16 %v1518, %v1517
        %v1531 = vpack.c.b16 %v1520, %v1519
        %v1532 = vpack.c.b16 %v1522, %v1521
        %v1533 = vpack.c.b16 %v1524, %v1523
        %v1534 = vpack.c.b16 %v1526, %v1525
        %1543 = vmatprep.subr.bf16.mxu0 0
        %1544 = vmatpush1.bf16.msra.mxu0 %v1527
        %1545 = vmatprep.subr.bf16.mxu0 0
        %1546 = vmatpush1.bf16.msra.mxu0 %v1528
        %1547 = vmatprep.subr.bf16.mxu0 0
        %1548 = vmatpush1.bf16.msra.mxu0 %v1529
        %1549 = vmatprep.subr.bf16.mxu0 0
        %1550 = vmatpush1.bf16.msra.mxu0 %v1530
        %1551 = vmatprep.subr.bf16.mxu0 0
        %1552 = vmatpush1.bf16.msra.mxu0 %v1531
        %1553 = vmatprep.subr.bf16.mxu0 0
        %1554 = vmatpush1.bf16.msra.mxu0 %v1532
        %1555 = vmatprep.subr.bf16.mxu0 0
        %1556 = vmatpush1.bf16.msra.mxu0 %v1533
        %1557 = vmatprep.subr.bf16.mxu0 0
        %1558 = vmatpush1.bf16.msra.mxu0 %v1534
        %1559 = vmatprep.subr.bf16.mxu0 0
        %1560 = vmatpush1.bf16.msra.mxu0 0
        %1561 = vmatprep.subr.bf16.mxu0 0
        %1562 = vmatpush1.bf16.msra.mxu0 0
        %1563 = vmatprep.subr.bf16.mxu0 0
        %1564 = vmatpush1.bf16.msra.mxu0 0
        %1565 = vmatprep.subr.bf16.mxu0 0
        %1566 = vmatpush1.bf16.msra.mxu0 0
        %1567 = vmatprep.subr.bf16.mxu0 0
        %1568 = vmatpush1.bf16.msra.mxu0 0
        %1569 = vmatprep.subr.bf16.mxu0 0
        %1570 = vmatpush1.bf16.msra.mxu0 0
        %1571 = vmatprep.subr.bf16.mxu0 0
        %1572 = vmatpush1.bf16.msra.mxu0 0
        %1573 = vmatprep.subr.bf16.mxu0 0
        %1574 = vmatpush1.bf16.msra.mxu0 0
        %1575 = vmatprep.mubr.bf16.mxu0 0
        %1576 = vmatmul.mubr.bf16.gmra.mrb[0].mxu0 %v1487
        %v1577 = vpop.f32.mrb[0].mxu0
        %v1578 = vadd.f32 0.0, %v1577
        %v1579 = vpop.f32.mrb[0].mxu0
        %v1580 = vpop.f32.mrb[0].mxu0
        %v1581 = vadd.f32 0.0, %v1580
        %v1582 = vpop.f32.mrb[0].mxu0
        %1583 = vmatprep.mubr.bf16.mxu0 0
        %1584 = vmatmul.mubr.bf16.gmra.mrb[0].mxu0 %v1488
        %v1585 = vpop.f32.mrb[0].mxu0
        %v1586 = vadd.f32 0.0, %v1585
        %v1587 = vpop.f32.mrb[0].mxu0
        %v1588 = vpop.f32.mrb[0].mxu0
        %v1589 = vadd.f32 0.0, %v1588
        %v1590 = vpop.f32.mrb[0].mxu0
        %1591 = vmatprep.mubr.bf16.mxu0 0
        %1592 = vmatmul.mubr.bf16.gmra.mrb[0].mxu0 %v1489
        %v1593 = vpop.f32.mrb[0].mxu0
        %v1594 = vadd.f32 0.0, %v1593
        %v1595 = vpop.f32.mrb[0].mxu0
        %v1596 = vpop.f32.mrb[0].mxu0
        %v1597 = vadd.f32 0.0, %v1596
        %v1598 = vpop.f32.mrb[0].mxu0
        %1599 = vmatprep.mubr.bf16.mxu0 0
        %1600 = vmatmul.mubr.bf16.gmra.mrb[0].mxu0 %v1490
        %v1601 = vpop.f32.mrb[0].mxu0
        %v1602 = vadd.f32 0.0, %v1601
        %v1603 = vpop.f32.mrb[0].mxu0
        %v1604 = vpop.f32.mrb[0].mxu0
        %v1605 = vadd.f32 0.0, %v1604
        %v1606 = vpop.f32.mrb[0].mxu0
        %1607 = vdwg.mxu0
        %v1608 = vadd.f32 %v1437, %v1578
        %v1609 = vadd.f32 %v1438, %v1581
        %v1610 = vadd.f32 %v1439, %v1586
        %v1611 = vadd.f32 %v1440, %v1589
        %v1612 = vadd.f32 %v1441, %v1594
        %v1613 = vadd.f32 %v1442, %v1597
        %v1614 = vadd.f32 %v1443, %v1602
        %v1615 = vadd.f32 %v1444, %v1605
        %s1616 = scalar_lea.vmem %s830, 216
        %v1617 = vld [vmem:[%s1616] sm:$0xf]
        %v1618 = vld [vmem:[%s1616 + $0x8] sm:$0xf]
        %v1619 = vld [vmem:[%s1616 + $0x10] sm:$0xf]
        %v1620 = vld [vmem:[%s1616 + $0x18] sm:$0xf]
        %v1621 = vld [vmem:[%s1616 + $0x20] sm:$0xf]
        %v1622 = vld [vmem:[%s1616 + $0x28] sm:$0xf]
        %v1623 = vld [vmem:[%s1616 + $0x30] sm:$0xf]
        %v1624 = vld [vmem:[%s1616 + $0x38] sm:$0xf]
        %s1625 = scalar_lea.vmem %s795, 256 [#allocation2]
        %v1626 = vld [vmem:[%s1625] sm:$0xf]
        %v1627 = vld [vmem:[%s1625 + $0x4] sm:$0xf]
        %v1628 = vld [vmem:[%s1625 + $0x8] sm:$0xf]
        %v1629 = vld [vmem:[%s1625 + $0xc] sm:$0xf]
        %v1630 = vld [vmem:[%s1625 + $0x10] sm:$0xf]
        %v1631 = vld [vmem:[%s1625 + $0x14] sm:$0xf]
        %v1632 = vld [vmem:[%s1625 + $0x18] sm:$0xf]
        %v1633 = vld [vmem:[%s1625 + $0x1c] sm:$0xf]
        %v1634 = vld [vmem:[%s1625 + $0x20] sm:$0xf]
        %v1635 = vld [vmem:[%s1625 + $0x24] sm:$0xf]
        %v1636 = vld [vmem:[%s1625 + $0x28] sm:$0xf]
        %v1637 = vld [vmem:[%s1625 + $0x2c] sm:$0xf]
        %v1638 = vld [vmem:[%s1625 + $0x30] sm:$0xf]
        %v1639 = vld [vmem:[%s1625 + $0x34] sm:$0xf]
        %v1640 = vld [vmem:[%s1625 + $0x38] sm:$0xf]
        %v1641 = vld [vmem:[%s1625 + $0x3c] sm:$0xf]
        %v1650 = vunpack.c.l.b16 %v1617
        %v1651 = vunpack.c.l.b16 %v1618
        %v1652 = vunpack.c.l.b16 %v1619
        %v1653 = vunpack.c.l.b16 %v1620
        %v1654 = vunpack.c.l.b16 %v1621
        %v1655 = vunpack.c.l.b16 %v1622
        %v1656 = vunpack.c.l.b16 %v1623
        %v1657 = vunpack.c.l.b16 %v1624
        %v1658 = vpack.c.b16 %v1651, %v1650
        %v1659 = vpack.c.b16 %v1653, %v1652
        %v1660 = vpack.c.b16 %v1655, %v1654
        %v1661 = vpack.c.b16 %v1657, %v1656
        %v1682 = vunpack.c.l.b16 %v1626
        %v1683 = vunpack.c.l.b16 %v1627
        %v1684 = vunpack.c.l.b16 %v1628
        %v1685 = vunpack.c.l.b16 %v1629
        %v1686 = vunpack.c.l.b16 %v1630
        %v1687 = vunpack.c.l.b16 %v1631
        %v1688 = vunpack.c.l.b16 %v1632
        %v1689 = vunpack.c.l.b16 %v1633
        %v1690 = vunpack.c.l.b16 %v1634
        %v1691 = vunpack.c.l.b16 %v1635
        %v1692 = vunpack.c.l.b16 %v1636
        %v1693 = vunpack.c.l.b16 %v1637
        %v1694 = vunpack.c.l.b16 %v1638
        %v1695 = vunpack.c.l.b16 %v1639
        %v1696 = vunpack.c.l.b16 %v1640
        %v1697 = vunpack.c.l.b16 %v1641
        %v1698 = vpack.c.b16 %v1683, %v1682
        %v1699 = vpack.c.b16 %v1685, %v1684
        %v1700 = vpack.c.b16 %v1687, %v1686
        %v1701 = vpack.c.b16 %v1689, %v1688
        %v1702 = vpack.c.b16 %v1691, %v1690
        %v1703 = vpack.c.b16 %v1693, %v1692
        %v1704 = vpack.c.b16 %v1695, %v1694
        %v1705 = vpack.c.b16 %v1697, %v1696
        %1714 = vmatprep.subr.bf16.mxu0 0
        %1715 = vmatpush1.bf16.msra.mxu0 %v1698
        %1716 = vmatprep.subr.bf16.mxu0 0
        %1717 = vmatpush1.bf16.msra.mxu0 %v1699
        %1718 = vmatprep.subr.bf16.mxu0 0
        %1719 = vmatpush1.bf16.msra.mxu0 %v1700
        %1720 = vmatprep.subr.bf16.mxu0 0
        %1721 = vmatpush1.bf16.msra.mxu0 %v1701
        %1722 = vmatprep.subr.bf16.mxu0 0
        %1723 = vmatpush1.bf16.msra.mxu0 %v1702
        %1724 = vmatprep.subr.bf16.mxu0 0
        %1725 = vmatpush1.bf16.msra.mxu0 %v1703
        %1726 = vmatprep.subr.bf16.mxu0 0
        %1727 = vmatpush1.bf16.msra.mxu0 %v1704
        %1728 = vmatprep.subr.bf16.mxu0 0
        %1729 = vmatpush1.bf16.msra.mxu0 %v1705
        %1730 = vmatprep.subr.bf16.mxu0 0
        %1731 = vmatpush1.bf16.msra.mxu0 0
        %1732 = vmatprep.subr.bf16.mxu0 0
        %1733 = vmatpush1.bf16.msra.mxu0 0
        %1734 = vmatprep.subr.bf16.mxu0 0
        %1735 = vmatpush1.bf16.msra.mxu0 0
        %1736 = vmatprep.subr.bf16.mxu0 0
        %1737 = vmatpush1.bf16.msra.mxu0 0
        %1738 = vmatprep.subr.bf16.mxu0 0
        %1739 = vmatpush1.bf16.msra.mxu0 0
        %1740 = vmatprep.subr.bf16.mxu0 0
        %1741 = vmatpush1.bf16.msra.mxu0 0
        %1742 = vmatprep.subr.bf16.mxu0 0
        %1743 = vmatpush1.bf16.msra.mxu0 0
        %1744 = vmatprep.subr.bf16.mxu0 0
        %1745 = vmatpush1.bf16.msra.mxu0 0
        %1746 = vmatprep.mubr.bf16.mxu0 0
        %1747 = vmatmul.mubr.bf16.gmra.mrb[0].mxu0 %v1658
        %v1748 = vpop.f32.mrb[0].mxu0
        %v1749 = vadd.f32 0.0, %v1748
        %v1750 = vpop.f32.mrb[0].mxu0
        %v1751 = vpop.f32.mrb[0].mxu0
        %v1752 = vadd.f32 0.0, %v1751
        %v1753 = vpop.f32.mrb[0].mxu0
        %1754 = vmatprep.mubr.bf16.mxu0 0
        %1755 = vmatmul.mubr.bf16.gmra.mrb[0].mxu0 %v1659
        %v1756 = vpop.f32.mrb[0].mxu0
        %v1757 = vadd.f32 0.0, %v1756
        %v1758 = vpop.f32.mrb[0].mxu0
        %v1759 = vpop.f32.mrb[0].mxu0
        %v1760 = vadd.f32 0.0, %v1759
        %v1761 = vpop.f32.mrb[0].mxu0
        %1762 = vmatprep.mubr.bf16.mxu0 0
        %1763 = vmatmul.mubr.bf16.gmra.mrb[0].mxu0 %v1660
        %v1764 = vpop.f32.mrb[0].mxu0
        %v1765 = vadd.f32 0.0, %v1764
        %v1766 = vpop.f32.mrb[0].mxu0
        %v1767 = vpop.f32.mrb[0].mxu0
        %v1768 = vadd.f32 0.0, %v1767
        %v1769 = vpop.f32.mrb[0].mxu0
        %1770 = vmatprep.mubr.bf16.mxu0 0
        %1771 = vmatmul.mubr.bf16.gmra.mrb[0].mxu0 %v1661
        %v1772 = vpop.f32.mrb[0].mxu0
        %v1773 = vadd.f32 0.0, %v1772
        %v1774 = vpop.f32.mrb[0].mxu0
        %v1775 = vpop.f32.mrb[0].mxu0
        %v1776 = vadd.f32 0.0, %v1775
        %v1777 = vpop.f32.mrb[0].mxu0
        %1778 = vdwg.mxu0
        %v1779 = vadd.f32 %v1608, %v1749
        %v1780 = vadd.f32 %v1609, %v1752
        %v1781 = vadd.f32 %v1610, %v1757
        %v1782 = vadd.f32 %v1611, %v1760
        %v1783 = vadd.f32 %v1612, %v1765
        %v1784 = vadd.f32 %v1613, %v1768
        %v1785 = vadd.f32 %v1614, %v1773
        %v1786 = vadd.f32 %v1615, %v1776
        %v1787 = vld [vmem:[%s1445] sm:$0xf]
        %v1788 = vld [vmem:[%s1445 + $0x4] sm:$0x1]
        %v1789 = vld [vmem:[%s1445 + $0x8] sm:$0xf]
        %v1790 = vld [vmem:[%s1445 + $0xc] sm:$0x1]
        %v1791 = vld [vmem:[%s1445 + $0x10] sm:$0xf]
        %v1792 = vld [vmem:[%s1445 + $0x14] sm:$0x1]
        %v1793 = vld [vmem:[%s1445 + $0x18] sm:$0xf]
        %v1794 = vld [vmem:[%s1445 + $0x1c] sm:$0x1]
        %v1795 = vld [vmem:[%s1445 + $0x20] sm:$0xf]
        %v1796 = vld [vmem:[%s1445 + $0x24] sm:$0x1]
        %v1797 = vld [vmem:[%s1445 + $0x28] sm:$0xf]
        %v1798 = vld [vmem:[%s1445 + $0x2c] sm:$0x1]
        %v1799 = vld [vmem:[%s1445 + $0x30] sm:$0xf]
        %v1800 = vld [vmem:[%s1445 + $0x34] sm:$0x1]
        %v1801 = vld [vmem:[%s1445 + $0x38] sm:$0xf]
        %v1802 = vld [vmem:[%s1445 + $0x3c] sm:$0x1]
        %v1804 = vshrl.u32 %v1787, 16
        %v1806 = vrot.slane %v1804, 4
        %v1807 = vshll.u32 %v1787, 16
        %v1809 = vrot.slane %v1807, 5
        %v1810 = vor.u32 %v1806, %v1809
        %v1811 = vrot.slane %v1810, 4
        %v1813 = vshll.u32 %v1788, 16
        %v1815 = vrot.slane %v1813, 5
        %v1816 = vsel %vm1178, %v1811, %v1815
        %v1818 = vshrl.u32 %v1789, 16
        %v1820 = vrot.slane %v1818, 4
        %v1821 = vshll.u32 %v1789, 16
        %v1823 = vrot.slane %v1821, 5
        %v1824 = vor.u32 %v1820, %v1823
        %v1825 = vrot.slane %v1824, 4
        %v1827 = vshll.u32 %v1790, 16
        %v1829 = vrot.slane %v1827, 5
        %v1830 = vsel %vm1178, %v1825, %v1829
        %v1832 = vshrl.u32 %v1791, 16
        %v1834 = vrot.slane %v1832, 4
        %v1835 = vshll.u32 %v1791, 16
        %v1837 = vrot.slane %v1835, 5
        %v1838 = vor.u32 %v1834, %v1837
        %v1839 = vrot.slane %v1838, 4
        %v1841 = vshll.u32 %v1792, 16
        %v1843 = vrot.slane %v1841, 5
        %v1844 = vsel %vm1178, %v1839, %v1843
        %v1846 = vshrl.u32 %v1793, 16
        %v1848 = vrot.slane %v1846, 4
        %v1849 = vshll.u32 %v1793, 16
        %v1851 = vrot.slane %v1849, 5
        %v1852 = vor.u32 %v1848, %v1851
        %v1853 = vrot.slane %v1852, 4
        %v1855 = vshll.u32 %v1794, 16
        %v1857 = vrot.slane %v1855, 5
        %v1858 = vsel %vm1178, %v1853, %v1857
        %v1860 = vshrl.u32 %v1795, 16
        %v1862 = vrot.slane %v1860, 4
        %v1863 = vshll.u32 %v1795, 16
        %v1865 = vrot.slane %v1863, 5
        %v1866 = vor.u32 %v1862, %v1865
        %v1867 = vrot.slane %v1866, 4
        %v1869 = vshll.u32 %v1796, 16
        %v1871 = vrot.slane %v1869, 5
        %v1872 = vsel %vm1178, %v1867, %v1871
        %v1874 = vshrl.u32 %v1797, 16
        %v1876 = vrot.slane %v1874, 4
        %v1877 = vshll.u32 %v1797, 16
        %v1879 = vrot.slane %v1877, 5
        %v1880 = vor.u32 %v1876, %v1879
        %v1881 = vrot.slane %v1880, 4
        %v1883 = vshll.u32 %v1798, 16
        %v1885 = vrot.slane %v1883, 5
        %v1886 = vsel %vm1178, %v1881, %v1885
        %v1888 = vshrl.u32 %v1799, 16
        %v1890 = vrot.slane %v1888, 4
        %v1891 = vshll.u32 %v1799, 16
        %v1893 = vrot.slane %v1891, 5
        %v1894 = vor.u32 %v1890, %v1893
        %v1895 = vrot.slane %v1894, 4
        %v1897 = vshll.u32 %v1800, 16
        %v1899 = vrot.slane %v1897, 5
        %v1900 = vsel %vm1178, %v1895, %v1899
        %v1902 = vshrl.u32 %v1801, 16
        %v1904 = vrot.slane %v1902, 4
        %v1905 = vshll.u32 %v1801, 16
        %v1907 = vrot.slane %v1905, 5
        %v1908 = vor.u32 %v1904, %v1907
        %v1909 = vrot.slane %v1908, 4
        %v1911 = vshll.u32 %v1802, 16
        %v1913 = vrot.slane %v1911, 5
        %v1914 = vsel %vm1178, %v1909, %v1913
        %s1915 = scalar_lea.vmem %s795, 320 [#allocation2]
        %v1916 = vld [vmem:[%s1915] sm:$0xf]
        %v1917 = vld [vmem:[%s1915 + $0x4] sm:$0xf]
        %v1918 = vld [vmem:[%s1915 + $0x8] sm:$0xf]
        %v1919 = vld [vmem:[%s1915 + $0xc] sm:$0xf]
        %v1920 = vld [vmem:[%s1915 + $0x10] sm:$0xf]
        %v1921 = vld [vmem:[%s1915 + $0x14] sm:$0xf]
        %v1922 = vld [vmem:[%s1915 + $0x18] sm:$0xf]
        %v1923 = vld [vmem:[%s1915 + $0x1c] sm:$0xf]
        %v1924 = vld [vmem:[%s1915 + $0x20] sm:$0xf]
        %v1925 = vld [vmem:[%s1915 + $0x24] sm:$0xf]
        %v1926 = vld [vmem:[%s1915 + $0x28] sm:$0xf]
        %v1927 = vld [vmem:[%s1915 + $0x2c] sm:$0xf]
        %v1928 = vld [vmem:[%s1915 + $0x30] sm:$0xf]
        %v1929 = vld [vmem:[%s1915 + $0x34] sm:$0xf]
        %v1930 = vld [vmem:[%s1915 + $0x38] sm:$0xf]
        %v1931 = vld [vmem:[%s1915 + $0x3c] sm:$0xf]
        %v1932 = vunpack.c.l.b16 %v1816
        %v1933 = vunpack.c.l.b16 %v1830
        %v1934 = vunpack.c.l.b16 %v1844
        %v1935 = vunpack.c.l.b16 %v1858
        %v1936 = vunpack.c.l.b16 %v1872
        %v1937 = vunpack.c.l.b16 %v1886
        %v1938 = vunpack.c.l.b16 %v1900
        %v1939 = vunpack.c.l.b16 %v1914
        %v1940 = vpack.c.b16 %v1933, %v1932
        %v1941 = vpack.c.b16 %v1935, %v1934
        %v1942 = vpack.c.b16 %v1937, %v1936
        %v1943 = vpack.c.b16 %v1939, %v1938
        %v1964 = vunpack.c.l.b16 %v1916
        %v1965 = vunpack.c.l.b16 %v1917
        %v1966 = vunpack.c.l.b16 %v1918
        %v1967 = vunpack.c.l.b16 %v1919
        %v1968 = vunpack.c.l.b16 %v1920
        %v1969 = vunpack.c.l.b16 %v1921
        %v1970 = vunpack.c.l.b16 %v1922
        %v1971 = vunpack.c.l.b16 %v1923
        %v1972 = vunpack.c.l.b16 %v1924
        %v1973 = vunpack.c.l.b16 %v1925
        %v1974 = vunpack.c.l.b16 %v1926
        %v1975 = vunpack.c.l.b16 %v1927
        %v1976 = vunpack.c.l.b16 %v1928
        %v1977 = vunpack.c.l.b16 %v1929
        %v1978 = vunpack.c.l.b16 %v1930
        %v1979 = vunpack.c.l.b16 %v1931
        %v1980 = vpack.c.b16 %v1965, %v1964
        %v1981 = vpack.c.b16 %v1967, %v1966
        %v1982 = vpack.c.b16 %v1969, %v1968
        %v1983 = vpack.c.b16 %v1971, %v1970
        %v1984 = vpack.c.b16 %v1973, %v1972
        %v1985 = vpack.c.b16 %v1975, %v1974
        %v1986 = vpack.c.b16 %v1977, %v1976
        %v1987 = vpack.c.b16 %v1979, %v1978
        %1996 = vmatprep.subr.bf16.mxu0 0
        %1997 = vmatpush1.bf16.msra.mxu0 %v1980
        %1998 = vmatprep.subr.bf16.mxu0 0
        %1999 = vmatpush1.bf16.msra.mxu0 %v1981
        %2000 = vmatprep.subr.bf16.mxu0 0
        %2001 = vmatpush1.bf16.msra.mxu0 %v1982
        %2002 = vmatprep.subr.bf16.mxu0 0
        %2003 = vmatpush1.bf16.msra.mxu0 %v1983
        %2004 = vmatprep.subr.bf16.mxu0 0
        %2005 = vmatpush1.bf16.msra.mxu0 %v1984
        %2006 = vmatprep.subr.bf16.mxu0 0
        %2007 = vmatpush1.bf16.msra.mxu0 %v1985
        %2008 = vmatprep.subr.bf16.mxu0 0
        %2009 = vmatpush1.bf16.msra.mxu0 %v1986
        %2010 = vmatprep.subr.bf16.mxu0 0
        %2011 = vmatpush1.bf16.msra.mxu0 %v1987
        %2012 = vmatprep.subr.bf16.mxu0 0
        %2013 = vmatpush1.bf16.msra.mxu0 0
        %2014 = vmatprep.subr.bf16.mxu0 0
        %2015 = vmatpush1.bf16.msra.mxu0 0
        %2016 = vmatprep.subr.bf16.mxu0 0
        %2017 = vmatpush1.bf16.msra.mxu0 0
        %2018 = vmatprep.subr.bf16.mxu0 0
        %2019 = vmatpush1.bf16.msra.mxu0 0
        %2020 = vmatprep.subr.bf16.mxu0 0
        %2021 = vmatpush1.bf16.msra.mxu0 0
        %2022 = vmatprep.subr.bf16.mxu0 0
        %2023 = vmatpush1.bf16.msra.mxu0 0
        %2024 = vmatprep.subr.bf16.mxu0 0
        %2025 = vmatpush1.bf16.msra.mxu0 0
        %2026 = vmatprep.subr.bf16.mxu0 0
        %2027 = vmatpush1.bf16.msra.mxu0 0
        %2028 = vmatprep.mubr.bf16.mxu0 0
        %2029 = vmatmul.mubr.bf16.gmra.mrb[0].mxu0 %v1940
        %v2030 = vpop.f32.mrb[0].mxu0
        %v2031 = vadd.f32 0.0, %v2030
        %v2032 = vpop.f32.mrb[0].mxu0
        %v2033 = vpop.f32.mrb[0].mxu0
        %v2034 = vadd.f32 0.0, %v2033
        %v2035 = vpop.f32.mrb[0].mxu0
        %2036 = vmatprep.mubr.bf16.mxu0 0
        %2037 = vmatmul.mubr.bf16.gmra.mrb[0].mxu0 %v1941
        %v2038 = vpop.f32.mrb[0].mxu0
        %v2039 = vadd.f32 0.0, %v2038
        %v2040 = vpop.f32.mrb[0].mxu0
        %v2041 = vpop.f32.mrb[0].mxu0
        %v2042 = vadd.f32 0.0, %v2041
        %v2043 = vpop.f32.mrb[0].mxu0
        %2044 = vmatprep.mubr.bf16.mxu0 0
        %2045 = vmatmul.mubr.bf16.gmra.mrb[0].mxu0 %v1942
        %v2046 = vpop.f32.mrb[0].mxu0
        %v2047 = vadd.f32 0.0, %v2046
        %v2048 = vpop.f32.mrb[0].mxu0
        %v2049 = vpop.f32.mrb[0].mxu0
        %v2050 = vadd.f32 0.0, %v2049
        %v2051 = vpop.f32.mrb[0].mxu0
        %2052 = vmatprep.mubr.bf16.mxu0 0
        %2053 = vmatmul.mubr.bf16.gmra.mrb[0].mxu0 %v1943
        %v2054 = vpop.f32.mrb[0].mxu0
        %v2055 = vadd.f32 0.0, %v2054
        %v2056 = vpop.f32.mrb[0].mxu0
        %v2057 = vpop.f32.mrb[0].mxu0
        %v2058 = vadd.f32 0.0, %v2057
        %v2059 = vpop.f32.mrb[0].mxu0
        %2060 = vdwg.mxu0
        %v2061 = vadd.f32 %v1779, %v2031
        %v2062 = vadd.f32 %v1780, %v2034
        %v2063 = vadd.f32 %v1781, %v2039
        %v2064 = vadd.f32 %v1782, %v2042
        %v2065 = vadd.f32 %v1783, %v2047
        %v2066 = vadd.f32 %v1784, %v2050
        %v2067 = vadd.f32 %v1785, %v2055
        %v2068 = vadd.f32 %v1786, %v2058
        %s2069 = scalar_lea.vmem %s830, 8
        %v2070 = vld [vmem:[%s2069] sm:$0xf]
        %v2071 = vld [vmem:[%s2069 + $0x8] sm:$0xf]
        %v2072 = vld [vmem:[%s2069 + $0x10] sm:$0xf]
        %v2073 = vld [vmem:[%s2069 + $0x18] sm:$0xf]
        %v2074 = vld [vmem:[%s2069 + $0x20] sm:$0xf]
        %v2075 = vld [vmem:[%s2069 + $0x28] sm:$0xf]
        %v2076 = vld [vmem:[%s2069 + $0x30] sm:$0xf]
        %v2077 = vld [vmem:[%s2069 + $0x38] sm:$0xf]
        %s2078 = scalar_lea.vmem %s795, 384 [#allocation2]
        %v2079 = vld [vmem:[%s2078] sm:$0xf]
        %v2080 = vld [vmem:[%s2078 + $0x4] sm:$0xf]
        %v2081 = vld [vmem:[%s2078 + $0x8] sm:$0xf]
        %v2082 = vld [vmem:[%s2078 + $0xc] sm:$0xf]
        %v2083 = vld [vmem:[%s2078 + $0x10] sm:$0xf]
        %v2084 = vld [vmem:[%s2078 + $0x14] sm:$0xf]
        %v2085 = vld [vmem:[%s2078 + $0x18] sm:$0xf]
        %v2086 = vld [vmem:[%s2078 + $0x1c] sm:$0xf]
        %v2087 = vld [vmem:[%s2078 + $0x20] sm:$0xf]
        %v2088 = vld [vmem:[%s2078 + $0x24] sm:$0xf]
        %v2089 = vld [vmem:[%s2078 + $0x28] sm:$0xf]
        %v2090 = vld [vmem:[%s2078 + $0x2c] sm:$0xf]
        %v2091 = vld [vmem:[%s2078 + $0x30] sm:$0xf]
        %v2092 = vld [vmem:[%s2078 + $0x34] sm:$0xf]
        %v2093 = vld [vmem:[%s2078 + $0x38] sm:$0xf]
        %v2094 = vld [vmem:[%s2078 + $0x3c] sm:$0xf]
        %v2103 = vunpack.c.l.b16 %v2070
        %v2104 = vunpack.c.l.b16 %v2071
        %v2105 = vunpack.c.l.b16 %v2072
        %v2106 = vunpack.c.l.b16 %v2073
        %v2107 = vunpack.c.l.b16 %v2074
        %v2108 = vunpack.c.l.b16 %v2075
        %v2109 = vunpack.c.l.b16 %v2076
        %v2110 = vunpack.c.l.b16 %v2077
        %v2111 = vpack.c.b16 %v2104, %v2103
        %v2112 = vpack.c.b16 %v2106, %v2105
        %v2113 = vpack.c.b16 %v2108, %v2107
        %v2114 = vpack.c.b16 %v2110, %v2109
        %v2135 = vunpack.c.l.b16 %v2079
        %v2136 = vunpack.c.l.b16 %v2080
        %v2137 = vunpack.c.l.b16 %v2081
        %v2138 = vunpack.c.l.b16 %v2082
        %v2139 = vunpack.c.l.b16 %v2083
        %v2140 = vunpack.c.l.b16 %v2084
        %v2141 = vunpack.c.l.b16 %v2085
        %v2142 = vunpack.c.l.b16 %v2086
        %v2143 = vunpack.c.l.b16 %v2087
        %v2144 = vunpack.c.l.b16 %v2088
        %v2145 = vunpack.c.l.b16 %v2089
        %v2146 = vunpack.c.l.b16 %v2090
        %v2147 = vunpack.c.l.b16 %v2091
        %v2148 = vunpack.c.l.b16 %v2092
        %v2149 = vunpack.c.l.b16 %v2093
        %v2150 = vunpack.c.l.b16 %v2094
        %v2151 = vpack.c.b16 %v2136, %v2135
        %v2152 = vpack.c.b16 %v2138, %v2137
        %v2153 = vpack.c.b16 %v2140, %v2139
        %v2154 = vpack.c.b16 %v2142, %v2141
        %v2155 = vpack.c.b16 %v2144, %v2143
        %v2156 = vpack.c.b16 %v2146, %v2145
        %v2157 = vpack.c.b16 %v2148, %v2147
        %v2158 = vpack.c.b16 %v2150, %v2149
        %2167 = vmatprep.subr.bf16.mxu0 0
        %2168 = vmatpush1.bf16.msra.mxu0 %v2151
        %2169 = vmatprep.subr.bf16.mxu0 0
        %2170 = vmatpush1.bf16.msra.mxu0 %v2152
        %2171 = vmatprep.subr.bf16.mxu0 0
        %2172 = vmatpush1.bf16.msra.mxu0 %v2153
        %2173 = vmatprep.subr.bf16.mxu0 0
        %2174 = vmatpush1.bf16.msra.mxu0 %v2154
        %2175 = vmatprep.subr.bf16.mxu0 0
        %2176 = vmatpush1.bf16.msra.mxu0 %v2155
        %2177 = vmatprep.subr.bf16.mxu0 0
        %2178 = vmatpush1.bf16.msra.mxu0 %v2156
        %2179 = vmatprep.subr.bf16.mxu0 0
        %2180 = vmatpush1.bf16.msra.mxu0 %v2157
        %2181 = vmatprep.subr.bf16.mxu0 0
        %2182 = vmatpush1.bf16.msra.mxu0 %v2158
        %2183 = vmatprep.subr.bf16.mxu0 0
        %2184 = vmatpush1.bf16.msra.mxu0 0
        %2185 = vmatprep.subr.bf16.mxu0 0
        %2186 = vmatpush1.bf16.msra.mxu0 0
        %2187 = vmatprep.subr.bf16.mxu0 0
        %2188 = vmatpush1.bf16.msra.mxu0 0
        %2189 = vmatprep.subr.bf16.mxu0 0
        %2190 = vmatpush1.bf16.msra.mxu0 0
        %2191 = vmatprep.subr.bf16.mxu0 0
        %2192 = vmatpush1.bf16.msra.mxu0 0
        %2193 = vmatprep.subr.bf16.mxu0 0
        %2194 = vmatpush1.bf16.msra.mxu0 0
        %2195 = vmatprep.subr.bf16.mxu0 0
        %2196 = vmatpush1.bf16.msra.mxu0 0
        %2197 = vmatprep.subr.bf16.mxu0 0
        %2198 = vmatpush1.bf16.msra.mxu0 0
        %2199 = vmatprep.mubr.bf16.mxu0 0
        %2200 = vmatmul.mubr.bf16.gmra.mrb[0].mxu0 %v2111
        %v2201 = vpop.f32.mrb[0].mxu0
        %v2202 = vadd.f32 0.0, %v2201
        %v2203 = vpop.f32.mrb[0].mxu0
        %v2204 = vpop.f32.mrb[0].mxu0
        %v2205 = vadd.f32 0.0, %v2204
        %v2206 = vpop.f32.mrb[0].mxu0
        %2207 = vmatprep.mubr.bf16.mxu0 0
        %2208 = vmatmul.mubr.bf16.gmra.mrb[0].mxu0 %v2112
        %v2209 = vpop.f32.mrb[0].mxu0
        %v2210 = vadd.f32 0.0, %v2209
        %v2211 = vpop.f32.mrb[0].mxu0
        %v2212 = vpop.f32.mrb[0].mxu0
        %v2213 = vadd.f32 0.0, %v2212
        %v2214 = vpop.f32.mrb[0].mxu0
        %2215 = vmatprep.mubr.bf16.mxu0 0
        %2216 = vmatmul.mubr.bf16.gmra.mrb[0].mxu0 %v2113
        %v2217 = vpop.f32.mrb[0].mxu0
        %v2218 = vadd.f32 0.0, %v2217
        %v2219 = vpop.f32.mrb[0].mxu0
        %v2220 = vpop.f32.mrb[0].mxu0
        %v2221 = vadd.f32 0.0, %v2220
        %v2222 = vpop.f32.mrb[0].mxu0
        %2223 = vmatprep.mubr.bf16.mxu0 0
        %2224 = vmatmul.mubr.bf16.gmra.mrb[0].mxu0 %v2114
        %v2225 = vpop.f32.mrb[0].mxu0
        %v2226 = vadd.f32 0.0, %v2225
        %v2227 = vpop.f32.mrb[0].mxu0
        %v2228 = vpop.f32.mrb[0].mxu0
        %v2229 = vadd.f32 0.0, %v2228
        %v2230 = vpop.f32.mrb[0].mxu0
        %2231 = vdwg.mxu0
        %v2232 = vadd.f32 %v2061, %v2202
        %v2233 = vadd.f32 %v2062, %v2205
        %v2234 = vadd.f32 %v2063, %v2210
        %v2235 = vadd.f32 %v2064, %v2213
        %v2236 = vadd.f32 %v2065, %v2218
        %v2237 = vadd.f32 %v2066, %v2221
        %v2238 = vadd.f32 %v2067, %v2226
        %v2239 = vadd.f32 %v2068, %v2229
        %s2240 = scalar_lea.vmem %s830, 80
        %v2241 = vld [vmem:[%s2240] sm:$0xf]
        %v2242 = vld [vmem:[%s2240 + $0x8] sm:$0xf]
        %v2243 = vld [vmem:[%s2240 + $0x10] sm:$0xf]
        %v2244 = vld [vmem:[%s2240 + $0x18] sm:$0xf]
        %v2245 = vld [vmem:[%s2240 + $0x20] sm:$0xf]
        %v2246 = vld [vmem:[%s2240 + $0x28] sm:$0xf]
        %v2247 = vld [vmem:[%s2240 + $0x30] sm:$0xf]
        %v2248 = vld [vmem:[%s2240 + $0x38] sm:$0xf]
        %s2249 = scalar_lea.vmem %s795, 448 [#allocation2]
        %v2250 = vld [vmem:[%s2249] sm:$0xf]
        %v2251 = vld [vmem:[%s2249 + $0x4] sm:$0xf]
        %v2252 = vld [vmem:[%s2249 + $0x8] sm:$0xf]
        %v2253 = vld [vmem:[%s2249 + $0xc] sm:$0xf]
        %v2254 = vld [vmem:[%s2249 + $0x10] sm:$0xf]
        %v2255 = vld [vmem:[%s2249 + $0x14] sm:$0xf]
        %v2256 = vld [vmem:[%s2249 + $0x18] sm:$0xf]
        %v2257 = vld [vmem:[%s2249 + $0x1c] sm:$0xf]
        %v2258 = vld [vmem:[%s2249 + $0x20] sm:$0xf]
        %v2259 = vld [vmem:[%s2249 + $0x24] sm:$0xf]
        %v2260 = vld [vmem:[%s2249 + $0x28] sm:$0xf]
        %v2261 = vld [vmem:[%s2249 + $0x2c] sm:$0xf]
        %v2262 = vld [vmem:[%s2249 + $0x30] sm:$0xf]
        %v2263 = vld [vmem:[%s2249 + $0x34] sm:$0xf]
        %v2264 = vld [vmem:[%s2249 + $0x38] sm:$0xf]
        %v2265 = vld [vmem:[%s2249 + $0x3c] sm:$0xf]
        %v2274 = vunpack.c.l.b16 %v2241
        %v2275 = vunpack.c.l.b16 %v2242
        %v2276 = vunpack.c.l.b16 %v2243
        %v2277 = vunpack.c.l.b16 %v2244
        %v2278 = vunpack.c.l.b16 %v2245
        %v2279 = vunpack.c.l.b16 %v2246
        %v2280 = vunpack.c.l.b16 %v2247
        %v2281 = vunpack.c.l.b16 %v2248
        %v2282 = vpack.c.b16 %v2275, %v2274
        %v2283 = vpack.c.b16 %v2277, %v2276
        %v2284 = vpack.c.b16 %v2279, %v2278
        %v2285 = vpack.c.b16 %v2281, %v2280
        %v2306 = vunpack.c.l.b16 %v2250
        %v2307 = vunpack.c.l.b16 %v2251
        %v2308 = vunpack.c.l.b16 %v2252
        %v2309 = vunpack.c.l.b16 %v2253
        %v2310 = vunpack.c.l.b16 %v2254
        %v2311 = vunpack.c.l.b16 %v2255
        %v2312 = vunpack.c.l.b16 %v2256
        %v2313 = vunpack.c.l.b16 %v2257
        %v2314 = vunpack.c.l.b16 %v2258
        %v2315 = vunpack.c.l.b16 %v2259
        %v2316 = vunpack.c.l.b16 %v2260
        %v2317 = vunpack.c.l.b16 %v2261
        %v2318 = vunpack.c.l.b16 %v2262
        %v2319 = vunpack.c.l.b16 %v2263
        %v2320 = vunpack.c.l.b16 %v2264
        %v2321 = vunpack.c.l.b16 %v2265
        %v2322 = vpack.c.b16 %v2307, %v2306
        %v2323 = vpack.c.b16 %v2309, %v2308
        %v2324 = vpack.c.b16 %v2311, %v2310
        %v2325 = vpack.c.b16 %v2313, %v2312
        %v2326 = vpack.c.b16 %v2315, %v2314
        %v2327 = vpack.c.b16 %v2317, %v2316
        %v2328 = vpack.c.b16 %v2319, %v2318
        %v2329 = vpack.c.b16 %v2321, %v2320
        %2338 = vmatprep.subr.bf16.mxu0 0
        %2339 = vmatpush1.bf16.msra.mxu0 %v2322
        %2340 = vmatprep.subr.bf16.mxu0 0
        %2341 = vmatpush1.bf16.msra.mxu0 %v2323
        %2342 = vmatprep.subr.bf16.mxu0 0
        %2343 = vmatpush1.bf16.msra.mxu0 %v2324
        %2344 = vmatprep.subr.bf16.mxu0 0
        %2345 = vmatpush1.bf16.msra.mxu0 %v2325
        %2346 = vmatprep.subr.bf16.mxu0 0
        %2347 = vmatpush1.bf16.msra.mxu0 %v2326
        %2348 = vmatprep.subr.bf16.mxu0 0
        %2349 = vmatpush1.bf16.msra.mxu0 %v2327
        %2350 = vmatprep.subr.bf16.mxu0 0
        %2351 = vmatpush1.bf16.msra.mxu0 %v2328
        %2352 = vmatprep.subr.bf16.mxu0 0
        %2353 = vmatpush1.bf16.msra.mxu0 %v2329
        %2354 = vmatprep.subr.bf16.mxu0 0
        %2355 = vmatpush1.bf16.msra.mxu0 0
        %2356 = vmatprep.subr.bf16.mxu0 0
        %2357 = vmatpush1.bf16.msra.mxu0 0
        %2358 = vmatprep.subr.bf16.mxu0 0
        %2359 = vmatpush1.bf16.msra.mxu0 0
        %2360 = vmatprep.subr.bf16.mxu0 0
        %2361 = vmatpush1.bf16.msra.mxu0 0
        %2362 = vmatprep.subr.bf16.mxu0 0
        %2363 = vmatpush1.bf16.msra.mxu0 0
        %2364 = vmatprep.subr.bf16.mxu0 0
        %2365 = vmatpush1.bf16.msra.mxu0 0
        %2366 = vmatprep.subr.bf16.mxu0 0
        %2367 = vmatpush1.bf16.msra.mxu0 0
        %2368 = vmatprep.subr.bf16.mxu0 0
        %2369 = vmatpush1.bf16.msra.mxu0 0
        %2370 = vmatprep.mubr.bf16.mxu0 0
        %2371 = vmatmul.mubr.bf16.gmra.mrb[0].mxu0 %v2282
        %v2372 = vpop.f32.mrb[0].mxu0
        %v2373 = vadd.f32 0.0, %v2372
        %v2374 = vpop.f32.mrb[0].mxu0
        %v2375 = vpop.f32.mrb[0].mxu0
        %v2376 = vadd.f32 0.0, %v2375
        %v2377 = vpop.f32.mrb[0].mxu0
        %2378 = vmatprep.mubr.bf16.mxu0 0
        %2379 = vmatmul.mubr.bf16.gmra.mrb[0].mxu0 %v2283
        %v2380 = vpop.f32.mrb[0].mxu0
        %v2381 = vadd.f32 0.0, %v2380
        %v2382 = vpop.f32.mrb[0].mxu0
        %v2383 = vpop.f32.mrb[0].mxu0
        %v2384 = vadd.f32 0.0, %v2383
        %v2385 = vpop.f32.mrb[0].mxu0
        %2386 = vmatprep.mubr.bf16.mxu0 0
        %2387 = vmatmul.mubr.bf16.gmra.mrb[0].mxu0 %v2284
        %v2388 = vpop.f32.mrb[0].mxu0
        %v2389 = vadd.f32 0.0, %v2388
        %v2390 = vpop.f32.mrb[0].mxu0
        %v2391 = vpop.f32.mrb[0].mxu0
        %v2392 = vadd.f32 0.0, %v2391
        %v2393 = vpop.f32.mrb[0].mxu0
        %2394 = vmatprep.mubr.bf16.mxu0 0
        %2395 = vmatmul.mubr.bf16.gmra.mrb[0].mxu0 %v2285
        %v2396 = vpop.f32.mrb[0].mxu0
        %v2397 = vadd.f32 0.0, %v2396
        %v2398 = vpop.f32.mrb[0].mxu0
        %v2399 = vpop.f32.mrb[0].mxu0
        %v2400 = vadd.f32 0.0, %v2399
        %v2401 = vpop.f32.mrb[0].mxu0
        %2402 = vdwg.mxu0
        %v2403 = vadd.f32 %v2232, %v2373
        %v2404 = vadd.f32 %v2233, %v2376
        %v2405 = vadd.f32 %v2234, %v2381
        %v2406 = vadd.f32 %v2235, %v2384
        %v2407 = vadd.f32 %v2236, %v2389
        %v2408 = vadd.f32 %v2237, %v2392
        %v2409 = vadd.f32 %v2238, %v2397
        %v2410 = vadd.f32 %v2239, %v2400
        %v2411 = vld [vmem:[%s2069] sm:$0xf]
        %v2412 = vld [vmem:[%s2069 + $0x4] sm:$0x1]
        %v2413 = vld [vmem:[%s2069 + $0x8] sm:$0xf]
        %v2414 = vld [vmem:[%s2069 + $0xc] sm:$0x1]
        %v2415 = vld [vmem:[%s2069 + $0x10] sm:$0xf]
        %v2416 = vld [vmem:[%s2069 + $0x14] sm:$0x1]
        %v2417 = vld [vmem:[%s2069 + $0x18] sm:$0xf]
        %v2418 = vld [vmem:[%s2069 + $0x1c] sm:$0x1]
        %v2419 = vld [vmem:[%s2069 + $0x20] sm:$0xf]
        %v2420 = vld [vmem:[%s2069 + $0x24] sm:$0x1]
        %v2421 = vld [vmem:[%s2069 + $0x28] sm:$0xf]
        %v2422 = vld [vmem:[%s2069 + $0x2c] sm:$0x1]
        %v2423 = vld [vmem:[%s2069 + $0x30] sm:$0xf]
        %v2424 = vld [vmem:[%s2069 + $0x34] sm:$0x1]
        %v2425 = vld [vmem:[%s2069 + $0x38] sm:$0xf]
        %v2426 = vld [vmem:[%s2069 + $0x3c] sm:$0x1]
        %v2428 = vshrl.u32 %v2411, 16
        %v2430 = vrot.slane %v2428, 4
        %v2431 = vshll.u32 %v2411, 16
        %v2433 = vrot.slane %v2431, 5
        %v2434 = vor.u32 %v2430, %v2433
        %v2435 = vrot.slane %v2434, 4
        %v2437 = vshll.u32 %v2412, 16
        %v2439 = vrot.slane %v2437, 5
        %v2440 = vsel %vm1178, %v2435, %v2439
        %v2442 = vshrl.u32 %v2413, 16
        %v2444 = vrot.slane %v2442, 4
        %v2445 = vshll.u32 %v2413, 16
        %v2447 = vrot.slane %v2445, 5
        %v2448 = vor.u32 %v2444, %v2447
        %v2449 = vrot.slane %v2448, 4
        %v2451 = vshll.u32 %v2414, 16
        %v2453 = vrot.slane %v2451, 5
        %v2454 = vsel %vm1178, %v2449, %v2453
        %v2456 = vshrl.u32 %v2415, 16
        %v2458 = vrot.slane %v2456, 4
        %v2459 = vshll.u32 %v2415, 16
        %v2461 = vrot.slane %v2459, 5
        %v2462 = vor.u32 %v2458, %v2461
        %v2463 = vrot.slane %v2462, 4
        %v2465 = vshll.u32 %v2416, 16
        %v2467 = vrot.slane %v2465, 5
        %v2468 = vsel %vm1178, %v2463, %v2467
        %v2470 = vshrl.u32 %v2417, 16
        %v2472 = vrot.slane %v2470, 4
        %v2473 = vshll.u32 %v2417, 16
        %v2475 = vrot.slane %v2473, 5
        %v2476 = vor.u32 %v2472, %v2475
        %v2477 = vrot.slane %v2476, 4
        %v2479 = vshll.u32 %v2418, 16
        %v2481 = vrot.slane %v2479, 5
        %v2482 = vsel %vm1178, %v2477, %v2481
        %v2484 = vshrl.u32 %v2419, 16
        %v2486 = vrot.slane %v2484, 4
        %v2487 = vshll.u32 %v2419, 16
        %v2489 = vrot.slane %v2487, 5
        %v2490 = vor.u32 %v2486, %v2489
        %v2491 = vrot.slane %v2490, 4
        %v2493 = vshll.u32 %v2420, 16
        %v2495 = vrot.slane %v2493, 5
        %v2496 = vsel %vm1178, %v2491, %v2495
        %v2498 = vshrl.u32 %v2421, 16
        %v2500 = vrot.slane %v2498, 4
        %v2501 = vshll.u32 %v2421, 16
        %v2503 = vrot.slane %v2501, 5
        %v2504 = vor.u32 %v2500, %v2503
        %v2505 = vrot.slane %v2504, 4
        %v2507 = vshll.u32 %v2422, 16
        %v2509 = vrot.slane %v2507, 5
        %v2510 = vsel %vm1178, %v2505, %v2509
        %v2512 = vshrl.u32 %v2423, 16
        %v2514 = vrot.slane %v2512, 4
        %v2515 = vshll.u32 %v2423, 16
        %v2517 = vrot.slane %v2515, 5
        %v2518 = vor.u32 %v2514, %v2517
        %v2519 = vrot.slane %v2518, 4
        %v2521 = vshll.u32 %v2424, 16
        %v2523 = vrot.slane %v2521, 5
        %v2524 = vsel %vm1178, %v2519, %v2523
        %v2526 = vshrl.u32 %v2425, 16
        %v2528 = vrot.slane %v2526, 4
        %v2529 = vshll.u32 %v2425, 16
        %v2531 = vrot.slane %v2529, 5
        %v2532 = vor.u32 %v2528, %v2531
        %v2533 = vrot.slane %v2532, 4
        %v2535 = vshll.u32 %v2426, 16
        %v2537 = vrot.slane %v2535, 5
        %v2538 = vsel %vm1178, %v2533, %v2537
        %s2539 = scalar_lea.vmem %s795, 512 [#allocation2]
        %v2540 = vld [vmem:[%s2539] sm:$0xf]
        %v2541 = vld [vmem:[%s2539 + $0x4] sm:$0xf]
        %v2542 = vld [vmem:[%s2539 + $0x8] sm:$0xf]
        %v2543 = vld [vmem:[%s2539 + $0xc] sm:$0xf]
        %v2544 = vld [vmem:[%s2539 + $0x10] sm:$0xf]
        %v2545 = vld [vmem:[%s2539 + $0x14] sm:$0xf]
        %v2546 = vld [vmem:[%s2539 + $0x18] sm:$0xf]
        %v2547 = vld [vmem:[%s2539 + $0x1c] sm:$0xf]
        %v2548 = vld [vmem:[%s2539 + $0x20] sm:$0xf]
        %v2549 = vld [vmem:[%s2539 + $0x24] sm:$0xf]
        %v2550 = vld [vmem:[%s2539 + $0x28] sm:$0xf]
        %v2551 = vld [vmem:[%s2539 + $0x2c] sm:$0xf]
        %v2552 = vld [vmem:[%s2539 + $0x30] sm:$0xf]
        %v2553 = vld [vmem:[%s2539 + $0x34] sm:$0xf]
        %v2554 = vld [vmem:[%s2539 + $0x38] sm:$0xf]
        %v2555 = vld [vmem:[%s2539 + $0x3c] sm:$0xf]
        %v2556 = vunpack.c.l.b16 %v2440
        %v2557 = vunpack.c.l.b16 %v2454
        %v2558 = vunpack.c.l.b16 %v2468
        %v2559 = vunpack.c.l.b16 %v2482
        %v2560 = vunpack.c.l.b16 %v2496
        %v2561 = vunpack.c.l.b16 %v2510
        %v2562 = vunpack.c.l.b16 %v2524
        %v2563 = vunpack.c.l.b16 %v2538
        %v2564 = vpack.c.b16 %v2557, %v2556
        %v2565 = vpack.c.b16 %v2559, %v2558
        %v2566 = vpack.c.b16 %v2561, %v2560
        %v2567 = vpack.c.b16 %v2563, %v2562
        %v2588 = vunpack.c.l.b16 %v2540
        %v2589 = vunpack.c.l.b16 %v2541
        %v2590 = vunpack.c.l.b16 %v2542
        %v2591 = vunpack.c.l.b16 %v2543
        %v2592 = vunpack.c.l.b16 %v2544
        %v2593 = vunpack.c.l.b16 %v2545
        %v2594 = vunpack.c.l.b16 %v2546
        %v2595 = vunpack.c.l.b16 %v2547
        %v2596 = vunpack.c.l.b16 %v2548
        %v2597 = vunpack.c.l.b16 %v2549
        %v2598 = vunpack.c.l.b16 %v2550
        %v2599 = vunpack.c.l.b16 %v2551
        %v2600 = vunpack.c.l.b16 %v2552
        %v2601 = vunpack.c.l.b16 %v2553
        %v2602 = vunpack.c.l.b16 %v2554
        %v2603 = vunpack.c.l.b16 %v2555
        %v2604 = vpack.c.b16 %v2589, %v2588
        %v2605 = vpack.c.b16 %v2591, %v2590
        %v2606 = vpack.c.b16 %v2593, %v2592
        %v2607 = vpack.c.b16 %v2595, %v2594
        %v2608 = vpack.c.b16 %v2597, %v2596
        %v2609 = vpack.c.b16 %v2599, %v2598
        %v2610 = vpack.c.b16 %v2601, %v2600
        %v2611 = vpack.c.b16 %v2603, %v2602
        %2620 = vmatprep.subr.bf16.mxu0 0
        %2621 = vmatpush1.bf16.msra.mxu0 %v2604
        %2622 = vmatprep.subr.bf16.mxu0 0
        %2623 = vmatpush1.bf16.msra.mxu0 %v2605
        %2624 = vmatprep.subr.bf16.mxu0 0
        %2625 = vmatpush1.bf16.msra.mxu0 %v2606
        %2626 = vmatprep.subr.bf16.mxu0 0
        %2627 = vmatpush1.bf16.msra.mxu0 %v2607
        %2628 = vmatprep.subr.bf16.mxu0 0
        %2629 = vmatpush1.bf16.msra.mxu0 %v2608
        %2630 = vmatprep.subr.bf16.mxu0 0
        %2631 = vmatpush1.bf16.msra.mxu0 %v2609
        %2632 = vmatprep.subr.bf16.mxu0 0
        %2633 = vmatpush1.bf16.msra.mxu0 %v2610
        %2634 = vmatprep.subr.bf16.mxu0 0
        %2635 = vmatpush1.bf16.msra.mxu0 %v2611
        %2636 = vmatprep.subr.bf16.mxu0 0
        %2637 = vmatpush1.bf16.msra.mxu0 0
        %2638 = vmatprep.subr.bf16.mxu0 0
        %2639 = vmatpush1.bf16.msra.mxu0 0
        %2640 = vmatprep.subr.bf16.mxu0 0
        %2641 = vmatpush1.bf16.msra.mxu0 0
        %2642 = vmatprep.subr.bf16.mxu0 0
        %2643 = vmatpush1.bf16.msra.mxu0 0
        %2644 = vmatprep.subr.bf16.mxu0 0
        %2645 = vmatpush1.bf16.msra.mxu0 0
        %2646 = vmatprep.subr.bf16.mxu0 0
        %2647 = vmatpush1.bf16.msra.mxu0 0
        %2648 = vmatprep.subr.bf16.mxu0 0
        %2649 = vmatpush1.bf16.msra.mxu0 0
        %2650 = vmatprep.subr.bf16.mxu0 0
        %2651 = vmatpush1.bf16.msra.mxu0 0
        %2652 = vmatprep.mubr.bf16.mxu0 0
        %2653 = vmatmul.mubr.bf16.gmra.mrb[0].mxu0 %v2564
        %v2654 = vpop.f32.mrb[0].mxu0
        %v2655 = vadd.f32 0.0, %v2654
        %v2656 = vpop.f32.mrb[0].mxu0
        %v2657 = vpop.f32.mrb[0].mxu0
        %v2658 = vadd.f32 0.0, %v2657
        %v2659 = vpop.f32.mrb[0].mxu0
        %2660 = vmatprep.mubr.bf16.mxu0 0
        %2661 = vmatmul.mubr.bf16.gmra.mrb[0].mxu0 %v2565
        %v2662 = vpop.f32.mrb[0].mxu0
        %v2663 = vadd.f32 0.0, %v2662
        %v2664 = vpop.f32.mrb[0].mxu0
        %v2665 = vpop.f32.mrb[0].mxu0
        %v2666 = vadd.f32 0.0, %v2665
        %v2667 = vpop.f32.mrb[0].mxu0
        %2668 = vmatprep.mubr.bf16.mxu0 0
        %2669 = vmatmul.mubr.bf16.gmra.mrb[0].mxu0 %v2566
        %v2670 = vpop.f32.mrb[0].mxu0
        %v2671 = vadd.f32 0.0, %v2670
        %v2672 = vpop.f32.mrb[0].mxu0
        %v2673 = vpop.f32.mrb[0].mxu0
        %v2674 = vadd.f32 0.0, %v2673
        %v2675 = vpop.f32.mrb[0].mxu0
        %2676 = vmatprep.mubr.bf16.mxu0 0
        %2677 = vmatmul.mubr.bf16.gmra.mrb[0].mxu0 %v2567
        %v2678 = vpop.f32.mrb[0].mxu0
        %v2679 = vadd.f32 0.0, %v2678
        %v2680 = vpop.f32.mrb[0].mxu0
        %v2681 = vpop.f32.mrb[0].mxu0
        %v2682 = vadd.f32 0.0, %v2681
        %v2683 = vpop.f32.mrb[0].mxu0
        %2684 = vdwg.mxu0
        %v2685 = vadd.f32 %v2403, %v2655
        %v2686 = vadd.f32 %v2404, %v2658
        %v2687 = vadd.f32 %v2405, %v2663
        %v2688 = vadd.f32 %v2406, %v2666
        %v2689 = vadd.f32 %v2407, %v2671
        %v2690 = vadd.f32 %v2408, %v2674
        %v2691 = vadd.f32 %v2409, %v2679
        %v2692 = vadd.f32 %v2410, %v2682
        %v2693 = vld [vmem:[%s834] sm:$0x1]
        %v2695 = vlaneseq
        %v2696 = vshrl.u32 %v2695, 7
        %v2697 = vsub.s32 0, %v2696
        %v2698 = vrot.slane %v2693, %v2697
        %v2700 = vadd.f32 %v2685, %v2698
        %v2701 = vadd.f32 %v2686, %v2698
        %v2702 = vadd.f32 %v2687, %v2698
        %v2703 = vadd.f32 %v2688, %v2698
        %v2704 = vadd.f32 %v2689, %v2698
        %v2705 = vadd.f32 %v2690, %v2698
        %v2706 = vadd.f32 %v2691, %v2698
        %v2707 = vadd.f32 %v2692, %v2698
        %v2708 = vmax.f32 %v2700, 0.0
        %v2709 = vmax.f32 %v2701, 0.0
        %v2710 = vmax.f32 %v2702, 0.0
        %v2711 = vmax.f32 %v2703, 0.0
        %v2712 = vmax.f32 %v2704, 0.0
        %v2713 = vmax.f32 %v2705, 0.0
        %v2714 = vmax.f32 %v2706, 0.0
        %v2715 = vmax.f32 %v2707, 0.0
        %2716 = vst [vmem:[%s824] sm:$0xff] %v2708
        %2717 = vst [vmem:[%s824 + $0x8] sm:$0xff] %v2709
        %2718 = vst [vmem:[%s824 + $0x10] sm:$0xff] %v2710
        %2719 = vst [vmem:[%s824 + $0x18] sm:$0xff] %v2711
        %2720 = vst [vmem:[%s824 + $0x20] sm:$0xff] %v2712
        %2721 = vst [vmem:[%s824 + $0x28] sm:$0xff] %v2713
        %2722 = vst [vmem:[%s824 + $0x30] sm:$0xff] %v2714
        %2723 = vst [vmem:[%s824 + $0x38] sm:$0xff] %v2715
        %s2724 = sand.u32 %s117, 1
        %s2725 = scalar_lea.sflag [#allocation4], %s2724
        %s2726 = sand.u32 %s117, 1
        %s2727 = smul.addr %s2726, 64
        %s2728 = scalar_lea.vmem [#allocation3], %s2727
        // Predicated region
        $region74: #{basic_conv2d.1} parent=68 // pred_check
          %p2729 = pneg %p127
        $region75: #{basic_conv2d.1} parent=68 // pred_check_branch
          %2731 = sbr.rel (%p2729) target = $region77
        $region76: #{basic_conv2d.1} parent=68 // pred_region
          %s2733 = ssub.s32 1024, 1024
          %2734 = vsyncadd %s2725, %s2733
          %s2735 = smul.addr %s21, 16
          %s2736 = sadd.s32 %s22, %s2735
          %s2737 = smul.addr %s2736, 128
          %s2738 = scalar_lea.hbm %s3, %s2737
          %s2739 = sshll.u32 %s2728, 4
          %s2740 = int_to_ptr.vmem [resolvable:$true] %s2739
          %2745 = dma.vmem_to_hbm [thread:$0]  %s2740, 1024, %s2738, %s2725, 128, 256, 8
        $region77: #{basic_conv2d.1} parent=68 // pred_fallthru
          _
      $region69: #{basic_conv2d.1} parent=5 // pred_fallthru
        _
      %p2746 = scmp.le.s32.totalorder 2, %s12
      // Predicated region
      $region78: #{basic_conv2d.1} parent=5 // pred_check
        %p2747 = pneg %p2746
      $region79: #{basic_conv2d.1} parent=5 // pred_check_branch
        %2749 = sbr.rel (%p2747) target = $region81
      $region80: #{basic_conv2d.1} parent=5 // pred_region
        %s2750 = ssub.s32 %s12, 2
        // Predicated region
        $region82: #{basic_conv2d.1} parent=80 // pred_check
          %p2751 = pneg %p133
        $region83: #{basic_conv2d.1} parent=80 // pred_check_branch
          %2753 = sbr.rel (%p2751) target = $region85
        $region84: #{basic_conv2d.1} parent=80 // pred_region
          %s2754 = sand.u32 %s118, 1
          %s2755 = scalar_lea.sflag [#allocation4], %s2754
          %s2756 = sand.u32 %s118, 1
          %s2757 = smul.addr %s2756, 64
          %s2758 = scalar_lea.vmem [#allocation3], %s2757
          %2759 = dma.done %s2755, 1024
        $region85: #{basic_conv2d.1} parent=80 // pred_fallthru
          _
      $region81: #{basic_conv2d.1} parent=5 // pred_fallthru
        _
    $region6: #{basic_conv2d.1} parent=1 // loop_footer
      %s16 = sadd.s32 1, %s12
    $region7: #{basic_conv2d.1} parent=1 // loop_footer_branch
      %11 = sbr.rel target = $region3
    $region8: #{basic_conv2d.1} parent=1 // loop_exit
      _
    %2760 = vsyncpa [#allocation4], 1
    %s2761 = scalar_lea.sflag [#allocation4], 1
    %2762 = vsyncpa %s2761, 1

</llo_original>
